<compile_context>
chip_gen: v7x
topology: tpu7x:2x2x1
jax: 0.10.0
libtpu: 0.0.40
codegen_flags: <defaults>
</compile_context>

<pallas_src>
import functools

import jax
import jax.numpy as jnp
from jax.experimental import pallas as pl
from jax.experimental.pallas import tpu as pltpu


# ----------------------------------------------------------------------------
# Fused kernel: student log-softmax / labels / confidence, teacher centering,
# teacher temperature softmax (implicit), matched-pair cross-entropy, accuracy,
# label statistics and center-update hard counts.  Emits PER-BLOCK partials;
# the wrapper reduces them (keeps the grid embarrassingly parallel).
# ----------------------------------------------------------------------------
def _clustering_kernel(s_ref, t_ref, lw_ref, hw_ref,            # inputs
                       metrics_ref, tcnt_ref, scnt_ref,         # per-block outputs
                       *, v_s, v_t, matches, student_temp, teacher_temp,
                       compute_changed_labels=True):
    f32 = jnp.float32
    tb, feat = s_ref.shape[1], s_ref.shape[2]

    # Hoisted iotas / constants (JAX does not CSE broadcast_in_dim; build once).
    iota_i = jax.lax.broadcasted_iota(jnp.int32, (1, feat), 1)
    iota_f = iota_i.astype(f32)
    lane = jax.lax.broadcasted_iota(jnp.int32, (1, 128), 1)
    ones_row = jnp.ones((1, tb), f32)          # MXU LHS for hard-count row sums

    lw = lw_ref[...].astype(f32)               # (1, F)
    hw = hw_ref[...].astype(f32)               # (1, F)

    def argmax_last(x, row_max):
        # First-occurrence argmax over the lane axis (torch semantics), reusing
        # an already-computed row max to save one XLU reduction per call.
        cand = jnp.where(x == row_max, iota_f, f32(feat))
        return jnp.min(cand, axis=-1, keepdims=True).astype(jnp.int32)

    # Static CE grouping: one summed-log-softmax slab per distinct match set.
    keys = [tuple(sorted(set(ip for ip in matches[iq] if 0 <= ip < v_s)))
            for iq in range(v_t)]
    uniq = sorted(set(k for k in keys if k))

    # ------------------- student views (one slab live at a time) -------------------
    s_logsm_sum = {k: None for k in uniq}      # persistent (tb,F) accumulators
    s_labels = []                              # (tb,1) per view (tiny)
    scnt = None                                # (1,F) running hard-label counts
    conf_st = f32(0.0)

    for ip in range(v_s):
        sv = s_ref[ip].astype(f32) * f32(1.0 / student_temp)     # (tb, F)
        s_max = jnp.max(sv, axis=-1, keepdims=True)
        s_shift = sv - s_max
        s_exp = jnp.exp(s_shift)
        s_sum = jnp.sum(s_exp, axis=-1, keepdims=True)
        # max(softmax) per row == 1/sum.  Metric only -> approx reciprocal on EUP
        # (documented: 'confidence_st' deviates from torch by ~1e-3 relative).
        conf_st = conf_st + jnp.sum(pl.reciprocal(s_sum, approx=True))
        lab = argmax_last(sv, s_max)                              # (tb, 1)
        s_labels.append(lab)
        # student hard-label counts on the MXU (exact: 0/1 values, f32 accumulate)
        oh = (iota_i == lab).astype(f32)                          # (tb, F)
        cnt = jnp.dot(ones_row, oh, preferred_element_type=f32)   # (1, F)
        scnt = cnt if scnt is None else scnt + cnt
        logsm = s_shift - jnp.log(s_sum)                          # F.log_softmax
        for k in uniq:
            if ip in k:
                s_logsm_sum[k] = logsm if s_logsm_sum[k] is None \
                    else s_logsm_sum[k] + logsm
    # sv / s_shift / s_exp / oh are dead here; only (tb,1) labels and the
    # per-match-set log-softmax sums stay live into the teacher path.

    # ------------------------------- teacher views ---------------------------------
    tcnt = None
    t_labels = []
    conf_tr = f32(0.0)
    changed = f32(0.0)
    loss = f32(0.0)
    acc = f32(0.0)

    for iq in range(v_t):
        tv = t_ref[iq].astype(f32)                                # (tb, F)
        if compute_changed_labels:                                # metric-only pass
            t_max = jnp.max(tv, axis=-1, keepdims=True)
            labels_pre = argmax_last(tv, t_max)
        # centering (torch no-grad path)
        tc = 1.0 - (1.0 - tv) * lw
        tc = (tc + 1.0) * hw - 1.0
        tc_max = jnp.max(tc, axis=-1, keepdims=True)
        tc_arg = argmax_last(tc, tc_max)
        # one-hot boost folded into a single select
        tc = jnp.where(iota_i == tc_arg, tc * f32(1.01), tc)
        tc = jnp.clip(tc, -1.0, 1.0)
        tc_max2 = jnp.max(tc, axis=-1, keepdims=True)
        labels_post = argmax_last(tc, tc_max2)
        t_labels.append(labels_post)
        if compute_changed_labels:
            changed = changed + jnp.sum((labels_post != labels_pre).astype(f32))

        # teacher temperature softmax -- q is never materialized
        t_exp = jnp.exp((tc - tc_max2) * f32(1.0 / teacher_temp))
        t_sum = jnp.sum(t_exp, axis=-1, keepdims=True)
        inv_t = pl.reciprocal(t_sum, approx=False)                # exact: feeds loss
        conf_tr = conf_tr + jnp.sum(inv_t)                        # max(q) per row == 1/t_sum

        # hard cluster assignments for update_center (counts on the MXU)
        hard = (iota_i == labels_post).astype(f32)
        hcnt = jnp.dot(ones_row, hard, preferred_element_type=f32)
        tcnt = hcnt if tcnt is None else tcnt + hcnt

        # fused cross-entropy over this teacher view's matched student views:
        #   sum_ip sum_f q*logp  ==  inv_t_row * sum_f( t_exp * sum_ip logp )
        k = keys[iq]
        if k:
            row_dot = jnp.sum(t_exp * s_logsm_sum[k], axis=-1, keepdims=True)  # (tb,1)
            loss = loss - jnp.sum(row_dot * inv_t)
            for ip in k:
                acc = acc + jnp.sum((labels_post == s_labels[ip]).astype(f32))

    # teacher label agreement between views 0 and 1
    if v_t >= 2:
        agree01 = jnp.sum((t_labels[0] == t_labels[1]).astype(f32))
    else:
        agree01 = f32(0.0)

    # ---- pack scalar partials into one lane vector (single vreg, 6 selects) ----
    m = jnp.zeros((1, 128), f32)
    for idx, val in ((0, loss), (1, acc), (2, changed),
                     (3, conf_tr), (4, conf_st), (5, agree01)):
        m = jnp.where(lane == idx, val, m)
    metrics_ref[0] = m
    tcnt_ref[0] = tcnt
    scnt_ref[0] = scnt


# ----------------------------------------------------------------------------
# Plain-JAX glue (parameter/buffer handling, centering modifiers, buffer update)
# ----------------------------------------------------------------------------
def centering_modifiers(center, out_dim, key):
    """F.normalize(center, p=1) * out_dim -> lower_w / higher_w (with tiny noise)."""
    norm = jnp.maximum(jnp.sum(jnp.abs(center), axis=-1, keepdims=True), 1e-12)
    c = center / norm * out_dim
    k1, k2 = jax.random.split(key)
    lower_w = 1.0 - jax.nn.relu(1.0 - c)
    lower_w = lower_w + jax.random.uniform(k1, lower_w.shape) * 0.001 * \
        (lower_w == 0).astype(jnp.float32)
    higher_w = 1.0 - jax.nn.relu(1.0 - 1.0 / c)
    higher_w = higher_w + jax.random.uniform(k2, higher_w.shape) * 0.001 * \
        (higher_w == 0).astype(jnp.float32)
    return lower_w.astype(jnp.float32), higher_w.astype(jnp.float32)


def _vmem_limit_bytes():
    """Scoped-VMEM limit = 75% of chip capacity (v7x: 64 MiB/core vs 128 MiB)."""
    try:
        cap = int(pltpu.get_tpu_info().vmem_capacity_bytes)
    except Exception:
        cap = 64 * 1024 * 1024   # conservative (v7x per-core size); safe everywhere
    return int(cap * 0.75)


def _num_tensorcores():
    """Best-effort TensorCore count per chip (v7x-class devices have 2)."""
    try:
        kind = jax.devices()[0].device_kind.lower()
        if "v7" in kind or "7x" in kind:
            return 2
    except Exception:
        pass
    return 1


def _pick_tb(B, out_dim, v_s, v_t, n_keys, in_bytes, vmem_limit, num_cores):
    """Largest batch tile fitting a live-footprint model; prefers block counts
    divisible by the TensorCore count so no core idles on v7x."""
    # double-buffered input slabs + ~6 live f32 compute slabs at peak
    # + one persistent log-softmax accumulator per distinct match set
    per_row = (2 * (v_s + v_t) * in_bytes + (6 + n_keys) * 4) * out_dim
    cap = max(8, int(vmem_limit * 0.7) // max(per_row, 1))
    cap = min(cap, 1024 if out_dim <= 1024 else 512, B)
    if num_cores > 1 and B >= 8 * num_cores:
        cap = min(cap, B // num_cores)           # guarantee >= num_cores blocks
    best = None
    for tb in range(cap - cap % 8, 7, -8):
        if B % tb != 0:
            continue
        if best is None:
            best = tb
        if (B // tb) % num_cores == 0:
            return tb
    if best is not None:
        return best
    # ragged / tiny batch: single block (tb == full extent is always layout-legal),
    # but verify it actually fits the VMEM budget instead of silently OOM-ing.
    if per_row * B > vmem_limit:
        raise ValueError(
            f"batch={B} with out_dim={out_dim} does not fit the VMEM budget "
            f"({vmem_limit} B) as a single block; pad the batch to a multiple of 8.")
    return B


def clustering_loss_forward(student_output, teacher_output, center, cluster_count,
                            *, v_s, v_t, matches, batch_size,
                            student_temp=0.1, teacher_temp=0.07,
                            center_momentum=0.99, rng_key=None, tb=None,
                            compute_changed_labels=True):
    out_dim = student_output.shape[-1]
    B = student_output.shape[0] // v_s
    assert teacher_output.shape[0] == v_t * B
    assert out_dim % 128 == 0
    assert out_dim < (1 << 24)        # f32 iota tie-break stays exact
    assert v_t >= 1 and v_s >= 1

    # einops.rearrange('(v b) f -> v b f')  (dtype preserved: bf16 stays bf16)
    s = student_output.reshape(v_s, B, out_dim)
    t = teacher_output.reshape(v_t, B, out_dim)

    if rng_key is None:
        rng_key = jax.random.PRNGKey(0)
    lower_w, higher_w = centering_modifiers(center, out_dim, rng_key)

    n_matches = sum(1 for iq in range(v_t) for ip in range(v_s) if ip in matches[iq])
    n_keys = len(set(tuple(sorted(set(ip for ip in matches[iq] if 0 <= ip < v_s)))
                     for iq in range(v_t)) - {()})

    vmem_limit = _vmem_limit_bytes()
    num_cores = _num_tensorcores()
    in_bytes = max(s.dtype.itemsize, t.dtype.itemsize)
    if tb is None:
        tb = _pick_tb(B, out_dim, v_s, v_t, max(n_keys, 1), in_bytes,
                      vmem_limit, num_cores)
    assert B % tb == 0 and (tb % 8 == 0 or tb == B)
    nblocks = B // tb

    # Megacore: explicit core-parallel sharding on 2-TC chips (plain "parallel"
    # measurably does not change codegen); only when the block count shards evenly.
    if num_cores > 1 and nblocks % num_cores == 0:
        dim_sem = (pltpu.CORE_PARALLEL,)
    else:
        dim_sem = ("parallel",)

    kernel = functools.partial(
        _clustering_kernel, v_s=v_s, v_t=v_t, matches=matches,
        student_temp=student_temp, teacher_temp=teacher_temp,
        compute_changed_labels=compute_changed_labels)

    elems = (v_s + v_t) * B * out_dim
    cost = pl.CostEstimate(
        flops=int(30 * elems),                       # ~elementwise-pass count
        transcendentals=int(2 * elems),              # exp + log per element
        bytes_accessed=int(elems * in_bytes + 2 * out_dim * 4))

    metrics_p, tcnt_p, scnt_p = pl.pallas_call(
        kernel,
        out_shape=(
            jax.ShapeDtypeStruct((nblocks, 1, 128), jnp.float32),      # packed scalars
            jax.ShapeDtypeStruct((nblocks, 1, out_dim), jnp.float32),  # teacher hard counts
            jax.ShapeDtypeStruct((nblocks, 1, out_dim), jnp.float32),  # student hard counts
        ),
        grid_spec=pltpu.PrefetchScalarGridSpec(
            num_scalar_prefetch=0,
            grid=(nblocks,),
            in_specs=[
                pl.BlockSpec((v_s, tb, out_dim), lambda i: (0, i, 0)),
                pl.BlockSpec((v_t, tb, out_dim), lambda i: (0, i, 0)),
                pl.BlockSpec((1, out_dim), lambda i: (0, 0)),
                pl.BlockSpec((1, out_dim), lambda i: (0, 0)),
            ],
            out_specs=[
                pl.BlockSpec((1, 1, 128), lambda i: (i, 0, 0)),
                pl.BlockSpec((1, 1, out_dim), lambda i: (i, 0, 0)),
                pl.BlockSpec((1, 1, out_dim), lambda i: (i, 0, 0)),
            ],
        ),
        compiler_params=pltpu.CompilerParams(
            dimension_semantics=dim_sem,
            vmem_limit_bytes=vmem_limit),
        cost_estimate=cost,
    )(s, t, lower_w, higher_w)

    # Reduce the tiny per-block partials in the wrapper (plain XLA).
    msum = jnp.sum(metrics_p, axis=(0, 1))   # (128,)
    tcnt = jnp.sum(tcnt_p, axis=(0, 1))      # (out_dim,)
    scnt = jnp.sum(scnt_p, axis=(0, 1))      # (out_dim,)

    total_loss = msum[0] / (B * n_matches)

    # update_center (buffer updates; EMA with center_momentum)
    # TODO(synk): distributed.all_reduce / cat_all_gather have no single-kernel
    # equivalent here; single-device semantics are implemented.
    center_update = tcnt / float(v_t * B)
    new_center = center * center_momentum + center_update[None, :] * (1.0 - center_momentum)
    new_cluster_count = cluster_count + tcnt

    metrics_dict = {
        "acc": msum[1] / (B * n_matches),
        "changed_labels": msum[2] / (v_t * B),
        "confidence_tr": msum[3] / (v_t * B),
        "confidence_st": msum[4] / (v_s * B),   # approx-reciprocal (metric only)
        "label_aggreement": msum[5] / B,
        "unique_labels_tr": jnp.sum((tcnt > 0).astype(jnp.float32)) / batch_size,
        "unique_labels_st": jnp.sum((scnt > 0).astype(jnp.float32)) / batch_size,
        "teacher_temp": jnp.float32(teacher_temp),
        "center_ema": jnp.float32(center_momentum),
        "llb_min": jnp.min(lower_w),
        "lhb_min": jnp.min(higher_w),
    }
    return total_loss, metrics_dict, new_center, new_cluster_count


if __name__ == "__main__":
    key = jax.random.PRNGKey(0)
    out_dim = 128          # number of clusters (lane-aligned)
    v_s, v_t = 2, 2        # student / teacher views
    B = 16                 # per-view batch
    matches = ((0, 1), (0, 1))   # training_match['matches']: student views per teacher view

    k1, k2, k3 = jax.random.split(key, 3)
    student_output = jax.random.normal(k1, (v_s * B, out_dim), jnp.float32)
    teacher_output = jnp.tanh(jax.random.normal(k2, (v_t * B, out_dim), jnp.float32))

    # buffers from __init__: center = ones(1, out_dim)/out_dim, cluster_count = zeros(out_dim)
    center = jnp.ones((1, out_dim), jnp.float32) / out_dim
    cluster_count = jnp.zeros((out_dim,), jnp.float32)

    total_loss, metrics, new_center, new_cc = clustering_loss_forward(
        student_output, teacher_output, center, cluster_count,
        v_s=v_s, v_t=v_t, matches=matches, batch_size=B, rng_key=k3)

    jax.block_until_ready((total_loss, metrics, new_center, new_cc))
    print("KERNEL_OK")
</pallas_src>

<mosaic_0001>
module attributes {stable_mosaic.version = 11 : i64} {
  func.func @_clustering_kernel(%arg0: i32, %arg1: memref<2x16x128xf32, #tpu.memory_space<vmem>>, %arg2: memref<2x16x128xf32, #tpu.memory_space<vmem>>, %arg3: memref<1x128xf32, #tpu.memory_space<vmem>>, %arg4: memref<1x128xf32, #tpu.memory_space<vmem>>, %arg5: memref<1x1x128xf32, #tpu.memory_space<vmem>>, %arg6: memref<1x1x128xf32, #tpu.memory_space<vmem>>, %arg7: memref<1x1x128xf32, #tpu.memory_space<vmem>>) attributes {dimension_semantics = [#tpu.dimension_semantics<parallel>], iteration_bounds = array<i64: 1>, scalar_prefetch = 0 : i64, scratch_operands = 0 : i64, tpu.core_type = #tpu.core_type<tc>, window_params = [{transform_indices = @transform_0, window_bounds = array<i64: 2, 16, 128>}, {transform_indices = @transform_1, window_bounds = array<i64: 2, 16, 128>}, {pipeline_mode = #tpu.pipeline_mode<synchronous>, transform_indices = @transform_2, window_bounds = array<i64: 1, 128>}, {pipeline_mode = #tpu.pipeline_mode<synchronous>, transform_indices = @transform_3, window_bounds = array<i64: 1, 128>}, {transform_indices = @transform_4, window_bounds = array<i64: 1, 1, 128>}, {transform_indices = @transform_5, window_bounds = array<i64: 1, 1, 128>}, {transform_indices = @transform_6, window_bounds = array<i64: 1, 1, 128>}]} {
    %0 = tpu.iota {dimensions = array<i32: 1>} : vector<1x128xi32>
    %1 = arith.sitofp %0 : vector<1x128xi32> to vector<1x128xf32>
    %2 = tpu.iota {dimensions = array<i32: 1>} : vector<1x128xi32>
    %cst = arith.constant 1.000000e+00 : f32
    %3 = vector.broadcast %cst : f32 to vector<1x16xf32>
    %c0 = arith.constant 0 : index
    %c0_0 = arith.constant 0 : index
    %4 = vector.load %arg3[%c0, %c0_0] : memref<1x128xf32, #tpu.memory_space<vmem>>, vector<1x128xf32>
    %c0_1 = arith.constant 0 : index
    %c0_2 = arith.constant 0 : index
    %5 = vector.load %arg4[%c0_1, %c0_2] : memref<1x128xf32, #tpu.memory_space<vmem>>, vector<1x128xf32>
    %c0_3 = arith.constant 0 : index
    %c0_4 = arith.constant 0 : index
    %c0_5 = arith.constant 0 : index
    %6 = vector.load %arg1[%c0_3, %c0_4, %c0_5] : memref<2x16x128xf32, #tpu.memory_space<vmem>>, vector<1x16x128xf32>
    %7 = vector.shape_cast %6 : vector<1x16x128xf32> to vector<16x128xf32>
    %cst_6 = arith.constant 1.000000e+01 : f32
    %8 = vector.broadcast %cst_6 : f32 to vector<16x128xf32>
    %9 = arith.mulf %7, %8 : vector<16x128xf32>
    %cst_7 = arith.constant dense<0xFF800000> : vector<16xf32>
    %10 = vector.multi_reduction <maximumf>, %9, %cst_7 [1] : vector<16x128xf32> to vector<16xf32>
    %11 = vector.shape_cast %10 : vector<16xf32> to vector<16x1xf32>
    %12 = vector.broadcast %11 : vector<16x1xf32> to vector<16x128xf32>
    %13 = arith.subf %9, %12 : vector<16x128xf32>
    %14 = math.exp %13 : vector<16x128xf32>
    %cst_8 = arith.constant dense<0.000000e+00> : vector<16xf32>
    %15 = vector.multi_reduction <add>, %14, %cst_8 [1] : vector<16x128xf32> to vector<16xf32>
    %16 = vector.shape_cast %15 : vector<16xf32> to vector<16x1xf32>
    %17 = tpu.reciprocal %16 {approx = true} : vector<16x1xf32> -> vector<16x1xf32>
    %18 = vector.shape_cast %17 : vector<16x1xf32> to vector<1x16x1xf32>
    %cst_9 = arith.constant dense<0.000000e+00> : vector<1xf32>
    %19 = vector.multi_reduction <add>, %18, %cst_9 [1, 2] : vector<1x16x1xf32> to vector<1xf32>
    %20 = vector.shape_cast %19 : vector<1xf32> to vector<1x1x1xf32>
    %21 = vector.extract %20[0, 0, 0] : f32 from vector<1x1x1xf32>
    %cst_10 = arith.constant 0.000000e+00 : f32
    %22 = arith.addf %cst_10, %21 : f32
    %23 = vector.broadcast %11 : vector<16x1xf32> to vector<16x128xf32>
    %24 = arith.cmpf oeq, %9, %23 : vector<16x128xf32>
    %cst_11 = arith.constant 1.280000e+02 : f32
    %25 = vector.shape_cast %1 : vector<1x128xf32> to vector<1x128xf32>
    %26 = vector.broadcast %25 : vector<1x128xf32> to vector<16x128xf32>
    %27 = vector.broadcast %cst_11 : f32 to vector<16x128xf32>
    %28 = arith.select %24, %26, %27 : vector<16x128xi1>, vector<16x128xf32>
    %cst_12 = arith.constant dense<0x7F800000> : vector<16xf32>
    %29 = vector.multi_reduction <minimumf>, %28, %cst_12 [1] : vector<16x128xf32> to vector<16xf32>
    %30 = vector.shape_cast %29 : vector<16xf32> to vector<16x1xf32>
    %31 = arith.fptosi %30 : vector<16x1xf32> to vector<16x1xi32>
    %32 = vector.broadcast %0 : vector<1x128xi32> to vector<16x128xi32>
    %33 = vector.broadcast %31 : vector<16x1xi32> to vector<16x128xi32>
    %34 = arith.cmpi eq, %32, %33 : vector<16x128xi32>
    %35 = arith.extui %34 : vector<16x128xi1> to vector<16x128xi32>
    %36 = arith.sitofp %35 : vector<16x128xi32> to vector<16x128xf32>
    %cst_13 = arith.constant dense<0.000000e+00> : vector<1x128xf32>
    %37 = tpu.matmul %3, %36, %cst_13 {dimension_numbers = #tpu.dot_dimension_numbers<[1], [0], [0], [1], [0, 0, 1, 1], [], []>} : vector<1x16xf32>, vector<16x128xf32>, vector<1x128xf32> -> vector<1x128xf32>
    %38 = math.log %16 : vector<16x1xf32>
    %39 = vector.broadcast %38 : vector<16x1xf32> to vector<16x128xf32>
    %40 = arith.subf %13, %39 : vector<16x128xf32>
    %c1 = arith.constant 1 : index
    %c0_14 = arith.constant 0 : index
    %c0_15 = arith.constant 0 : index
    %41 = vector.load %arg1[%c1, %c0_14, %c0_15] : memref<2x16x128xf32, #tpu.memory_space<vmem>>, vector<1x16x128xf32>
    %42 = vector.shape_cast %41 : vector<1x16x128xf32> to vector<16x128xf32>
    %cst_16 = arith.constant 1.000000e+01 : f32
    %43 = vector.broadcast %cst_16 : f32 to vector<16x128xf32>
    %44 = arith.mulf %42, %43 : vector<16x128xf32>
    %cst_17 = arith.constant dense<0xFF800000> : vector<16xf32>
    %45 = vector.multi_reduction <maximumf>, %44, %cst_17 [1] : vector<16x128xf32> to vector<16xf32>
    %46 = vector.shape_cast %45 : vector<16xf32> to vector<16x1xf32>
    %47 = vector.broadcast %46 : vector<16x1xf32> to vector<16x128xf32>
    %48 = arith.subf %44, %47 : vector<16x128xf32>
    %49 = math.exp %48 : vector<16x128xf32>
    %cst_18 = arith.constant dense<0.000000e+00> : vector<16xf32>
    %50 = vector.multi_reduction <add>, %49, %cst_18 [1] : vector<16x128xf32> to vector<16xf32>
    %51 = vector.shape_cast %50 : vector<16xf32> to vector<16x1xf32>
    %52 = tpu.reciprocal %51 {approx = true} : vector<16x1xf32> -> vector<16x1xf32>
    %53 = vector.shape_cast %52 : vector<16x1xf32> to vector<1x16x1xf32>
    %cst_19 = arith.constant dense<0.000000e+00> : vector<1xf32>
    %54 = vector.multi_reduction <add>, %53, %cst_19 [1, 2] : vector<1x16x1xf32> to vector<1xf32>
    %55 = vector.shape_cast %54 : vector<1xf32> to vector<1x1x1xf32>
    %56 = vector.extract %55[0, 0, 0] : f32 from vector<1x1x1xf32>
    %57 = arith.addf %22, %56 : f32
    %58 = vector.broadcast %46 : vector<16x1xf32> to vector<16x128xf32>
    %59 = arith.cmpf oeq, %44, %58 : vector<16x128xf32>
    %cst_20 = arith.constant 1.280000e+02 : f32
    %60 = vector.shape_cast %1 : vector<1x128xf32> to vector<1x128xf32>
    %61 = vector.broadcast %60 : vector<1x128xf32> to vector<16x128xf32>
    %62 = vector.broadcast %cst_20 : f32 to vector<16x128xf32>
    %63 = arith.select %59, %61, %62 : vector<16x128xi1>, vector<16x128xf32>
    %cst_21 = arith.constant dense<0x7F800000> : vector<16xf32>
    %64 = vector.multi_reduction <minimumf>, %63, %cst_21 [1] : vector<16x128xf32> to vector<16xf32>
    %65 = vector.shape_cast %64 : vector<16xf32> to vector<16x1xf32>
    %66 = arith.fptosi %65 : vector<16x1xf32> to vector<16x1xi32>
    %67 = vector.broadcast %0 : vector<1x128xi32> to vector<16x128xi32>
    %68 = vector.broadcast %66 : vector<16x1xi32> to vector<16x128xi32>
    %69 = arith.cmpi eq, %67, %68 : vector<16x128xi32>
    %70 = arith.extui %69 : vector<16x128xi1> to vector<16x128xi32>
    %71 = arith.sitofp %70 : vector<16x128xi32> to vector<16x128xf32>
    %cst_22 = arith.constant dense<0.000000e+00> : vector<1x128xf32>
    %72 = tpu.matmul %3, %71, %cst_22 {dimension_numbers = #tpu.dot_dimension_numbers<[1], [0], [0], [1], [0, 0, 1, 1], [], []>} : vector<1x16xf32>, vector<16x128xf32>, vector<1x128xf32> -> vector<1x128xf32>
    %73 = arith.addf %37, %72 : vector<1x128xf32>
    %74 = math.log %51 : vector<16x1xf32>
    %75 = vector.broadcast %74 : vector<16x1xf32> to vector<16x128xf32>
    %76 = arith.subf %48, %75 : vector<16x128xf32>
    %77 = arith.addf %40, %76 : vector<16x128xf32>
    %c0_23 = arith.constant 0 : index
    %c0_24 = arith.constant 0 : index
    %c0_25 = arith.constant 0 : index
    %78 = vector.load %arg2[%c0_23, %c0_24, %c0_25] : memref<2x16x128xf32, #tpu.memory_space<vmem>>, vector<1x16x128xf32>
    %79 = vector.shape_cast %78 : vector<1x16x128xf32> to vector<16x128xf32>
    %cst_26 = arith.constant dense<0xFF800000> : vector<16xf32>
    %80 = vector.multi_reduction <maximumf>, %79, %cst_26 [1] : vector<16x128xf32> to vector<16xf32>
    %81 = vector.shape_cast %80 : vector<16xf32> to vector<16x1xf32>
    %82 = vector.broadcast %81 : vector<16x1xf32> to vector<16x128xf32>
    %83 = arith.cmpf oeq, %79, %82 : vector<16x128xf32>
    %cst_27 = arith.constant 1.280000e+02 : f32
    %84 = vector.shape_cast %1 : vector<1x128xf32> to vector<1x128xf32>
    %85 = vector.broadcast %84 : vector<1x128xf32> to vector<16x128xf32>
    %86 = vector.broadcast %cst_27 : f32 to vector<16x128xf32>
    %87 = arith.select %83, %85, %86 : vector<16x128xi1>, vector<16x128xf32>
    %cst_28 = arith.constant dense<0x7F800000> : vector<16xf32>
    %88 = vector.multi_reduction <minimumf>, %87, %cst_28 [1] : vector<16x128xf32> to vector<16xf32>
    %89 = vector.shape_cast %88 : vector<16xf32> to vector<16x1xf32>
    %90 = arith.fptosi %89 : vector<16x1xf32> to vector<16x1xi32>
    %cst_29 = arith.constant 1.000000e+00 : f32
    %91 = vector.broadcast %cst_29 : f32 to vector<16x128xf32>
    %92 = arith.subf %91, %79 : vector<16x128xf32>
    %93 = vector.broadcast %4 : vector<1x128xf32> to vector<16x128xf32>
    %94 = arith.mulf %92, %93 : vector<16x128xf32>
    %cst_30 = arith.constant 1.000000e+00 : f32
    %95 = vector.broadcast %cst_30 : f32 to vector<16x128xf32>
    %96 = arith.subf %95, %94 : vector<16x128xf32>
    %cst_31 = arith.constant 1.000000e+00 : f32
    %97 = vector.broadcast %cst_31 : f32 to vector<16x128xf32>
    %98 = arith.addf %96, %97 : vector<16x128xf32>
    %99 = vector.broadcast %5 : vector<1x128xf32> to vector<16x128xf32>
    %100 = arith.mulf %98, %99 : vector<16x128xf32>
    %cst_32 = arith.constant 1.000000e+00 : f32
    %101 = vector.broadcast %cst_32 : f32 to vector<16x128xf32>
    %102 = arith.subf %100, %101 : vector<16x128xf32>
    %cst_33 = arith.constant dense<0xFF800000> : vector<16xf32>
    %103 = vector.multi_reduction <maximumf>, %102, %cst_33 [1] : vector<16x128xf32> to vector<16xf32>
    %104 = vector.shape_cast %103 : vector<16xf32> to vector<16x1xf32>
    %105 = vector.broadcast %104 : vector<16x1xf32> to vector<16x128xf32>
    %106 = arith.cmpf oeq, %102, %105 : vector<16x128xf32>
    %cst_34 = arith.constant 1.280000e+02 : f32
    %107 = vector.shape_cast %1 : vector<1x128xf32> to vector<1x128xf32>
    %108 = vector.broadcast %107 : vector<1x128xf32> to vector<16x128xf32>
    %109 = vector.broadcast %cst_34 : f32 to vector<16x128xf32>
    %110 = arith.select %106, %108, %109 : vector<16x128xi1>, vector<16x128xf32>
    %cst_35 = arith.constant dense<0x7F800000> : vector<16xf32>
    %111 = vector.multi_reduction <minimumf>, %110, %cst_35 [1] : vector<16x128xf32> to vector<16xf32>
    %112 = vector.shape_cast %111 : vector<16xf32> to vector<16x1xf32>
    %113 = arith.fptosi %112 : vector<16x1xf32> to vector<16x1xi32>
    %114 = vector.broadcast %0 : vector<1x128xi32> to vector<16x128xi32>
    %115 = vector.broadcast %113 : vector<16x1xi32> to vector<16x128xi32>
    %116 = arith.cmpi eq, %114, %115 : vector<16x128xi32>
    %cst_36 = arith.constant 1.010000e+00 : f32
    %117 = vector.broadcast %cst_36 : f32 to vector<16x128xf32>
    %118 = arith.mulf %102, %117 : vector<16x128xf32>
    %119 = arith.select %116, %118, %102 : vector<16x128xi1>, vector<16x128xf32>
    %cst_37 = arith.constant -1.000000e+00 : f32
    %cst_38 = arith.constant 1.000000e+00 : f32
    %120 = vector.broadcast %cst_37 : f32 to vector<16x128xf32>
    %121 = arith.maximumf %120, %119 : vector<16x128xf32>
    %122 = vector.broadcast %cst_38 : f32 to vector<16x128xf32>
    %123 = arith.minimumf %122, %121 : vector<16x128xf32>
    %cst_39 = arith.constant dense<0xFF800000> : vector<16xf32>
    %124 = vector.multi_reduction <maximumf>, %123, %cst_39 [1] : vector<16x128xf32> to vector<16xf32>
    %125 = vector.shape_cast %124 : vector<16xf32> to vector<16x1xf32>
    %126 = vector.broadcast %125 : vector<16x1xf32> to vector<16x128xf32>
    %127 = arith.cmpf oeq, %123, %126 : vector<16x128xf32>
    %cst_40 = arith.constant 1.280000e+02 : f32
    %128 = vector.shape_cast %1 : vector<1x128xf32> to vector<1x128xf32>
    %129 = vector.broadcast %128 : vector<1x128xf32> to vector<16x128xf32>
    %130 = vector.broadcast %cst_40 : f32 to vector<16x128xf32>
    %131 = arith.select %127, %129, %130 : vector<16x128xi1>, vector<16x128xf32>
    %cst_41 = arith.constant dense<0x7F800000> : vector<16xf32>
    %132 = vector.multi_reduction <minimumf>, %131, %cst_41 [1] : vector<16x128xf32> to vector<16xf32>
    %133 = vector.shape_cast %132 : vector<16xf32> to vector<16x1xf32>
    %134 = arith.fptosi %133 : vector<16x1xf32> to vector<16x1xi32>
    %135 = arith.cmpi ne, %134, %90 : vector<16x1xi32>
    %136 = arith.extui %135 : vector<16x1xi1> to vector<16x1xi32>
    %137 = arith.sitofp %136 : vector<16x1xi32> to vector<16x1xf32>
    %138 = vector.shape_cast %137 : vector<16x1xf32> to vector<1x16x1xf32>
    %cst_42 = arith.constant dense<0.000000e+00> : vector<1xf32>
    %139 = vector.multi_reduction <add>, %138, %cst_42 [1, 2] : vector<1x16x1xf32> to vector<1xf32>
    %140 = vector.shape_cast %139 : vector<1xf32> to vector<1x1x1xf32>
    %141 = vector.extract %140[0, 0, 0] : f32 from vector<1x1x1xf32>
    %cst_43 = arith.constant 0.000000e+00 : f32
    %142 = arith.addf %cst_43, %141 : f32
    %143 = vector.broadcast %125 : vector<16x1xf32> to vector<16x128xf32>
    %144 = arith.subf %123, %143 : vector<16x128xf32>
    %cst_44 = arith.constant 14.2857141 : f32
    %145 = vector.broadcast %cst_44 : f32 to vector<16x128xf32>
    %146 = arith.mulf %144, %145 : vector<16x128xf32>
    %147 = math.exp %146 : vector<16x128xf32>
    %cst_45 = arith.constant dense<0.000000e+00> : vector<16xf32>
    %148 = vector.multi_reduction <add>, %147, %cst_45 [1] : vector<16x128xf32> to vector<16xf32>
    %149 = vector.shape_cast %148 : vector<16xf32> to vector<16x1xf32>
    %150 = tpu.reciprocal %149 : vector<16x1xf32> -> vector<16x1xf32>
    %151 = vector.shape_cast %150 : vector<16x1xf32> to vector<1x16x1xf32>
    %cst_46 = arith.constant dense<0.000000e+00> : vector<1xf32>
    %152 = vector.multi_reduction <add>, %151, %cst_46 [1, 2] : vector<1x16x1xf32> to vector<1xf32>
    %153 = vector.shape_cast %152 : vector<1xf32> to vector<1x1x1xf32>
    %154 = vector.extract %153[0, 0, 0] : f32 from vector<1x1x1xf32>
    %cst_47 = arith.constant 0.000000e+00 : f32
    %155 = arith.addf %cst_47, %154 : f32
    %156 = vector.broadcast %0 : vector<1x128xi32> to vector<16x128xi32>
    %157 = vector.broadcast %134 : vector<16x1xi32> to vector<16x128xi32>
    %158 = arith.cmpi eq, %156, %157 : vector<16x128xi32>
    %159 = arith.extui %158 : vector<16x128xi1> to vector<16x128xi32>
    %160 = arith.sitofp %159 : vector<16x128xi32> to vector<16x128xf32>
    %cst_48 = arith.constant dense<0.000000e+00> : vector<1x128xf32>
    %161 = tpu.matmul %3, %160, %cst_48 {dimension_numbers = #tpu.dot_dimension_numbers<[1], [0], [0], [1], [0, 0, 1, 1], [], []>} : vector<1x16xf32>, vector<16x128xf32>, vector<1x128xf32> -> vector<1x128xf32>
    %162 = arith.mulf %147, %77 : vector<16x128xf32>
    %cst_49 = arith.constant dense<0.000000e+00> : vector<16xf32>
    %163 = vector.multi_reduction <add>, %162, %cst_49 [1] : vector<16x128xf32> to vector<16xf32>
    %164 = vector.shape_cast %163 : vector<16xf32> to vector<16x1xf32>
    %165 = arith.mulf %164, %150 : vector<16x1xf32>
    %166 = vector.shape_cast %165 : vector<16x1xf32> to vector<1x16x1xf32>
    %cst_50 = arith.constant dense<0.000000e+00> : vector<1xf32>
    %167 = vector.multi_reduction <add>, %166, %cst_50 [1, 2] : vector<1x16x1xf32> to vector<1xf32>
    %168 = vector.shape_cast %167 : vector<1xf32> to vector<1x1x1xf32>
    %169 = vector.extract %168[0, 0, 0] : f32 from vector<1x1x1xf32>
    %cst_51 = arith.constant 0.000000e+00 : f32
    %170 = arith.subf %cst_51, %169 : f32
    %171 = arith.cmpi eq, %134, %31 : vector<16x1xi32>
    %172 = arith.extui %171 : vector<16x1xi1> to vector<16x1xi32>
    %173 = arith.sitofp %172 : vector<16x1xi32> to vector<16x1xf32>
    %174 = vector.shape_cast %173 : vector<16x1xf32> to vector<1x16x1xf32>
    %cst_52 = arith.constant dense<0.000000e+00> : vector<1xf32>
    %175 = vector.multi_reduction <add>, %174, %cst_52 [1, 2] : vector<1x16x1xf32> to vector<1xf32>
    %176 = vector.shape_cast %175 : vector<1xf32> to vector<1x1x1xf32>
    %177 = vector.extract %176[0, 0, 0] : f32 from vector<1x1x1xf32>
    %cst_53 = arith.constant 0.000000e+00 : f32
    %178 = arith.addf %cst_53, %177 : f32
    %179 = arith.cmpi eq, %134, %66 : vector<16x1xi32>
    %180 = arith.extui %179 : vector<16x1xi1> to vector<16x1xi32>
    %181 = arith.sitofp %180 : vector<16x1xi32> to vector<16x1xf32>
    %182 = vector.shape_cast %181 : vector<16x1xf32> to vector<1x16x1xf32>
    %cst_54 = arith.constant dense<0.000000e+00> : vector<1xf32>
    %183 = vector.multi_reduction <add>, %182, %cst_54 [1, 2] : vector<1x16x1xf32> to vector<1xf32>
    %184 = vector.shape_cast %183 : vector<1xf32> to vector<1x1x1xf32>
    %185 = vector.extract %184[0, 0, 0] : f32 from vector<1x1x1xf32>
    %186 = arith.addf %178, %185 : f32
    %c1_55 = arith.constant 1 : index
    %c0_56 = arith.constant 0 : index
    %c0_57 = arith.constant 0 : index
    %187 = vector.load %arg2[%c1_55, %c0_56, %c0_57] : memref<2x16x128xf32, #tpu.memory_space<vmem>>, vector<1x16x128xf32>
    %188 = vector.shape_cast %187 : vector<1x16x128xf32> to vector<16x128xf32>
    %cst_58 = arith.constant dense<0xFF800000> : vector<16xf32>
    %189 = vector.multi_reduction <maximumf>, %188, %cst_58 [1] : vector<16x128xf32> to vector<16xf32>
    %190 = vector.shape_cast %189 : vector<16xf32> to vector<16x1xf32>
    %191 = vector.broadcast %190 : vector<16x1xf32> to vector<16x128xf32>
    %192 = arith.cmpf oeq, %188, %191 : vector<16x128xf32>
    %cst_59 = arith.constant 1.280000e+02 : f32
    %193 = vector.shape_cast %1 : vector<1x128xf32> to vector<1x128xf32>
    %194 = vector.broadcast %193 : vector<1x128xf32> to vector<16x128xf32>
    %195 = vector.broadcast %cst_59 : f32 to vector<16x128xf32>
    %196 = arith.select %192, %194, %195 : vector<16x128xi1>, vector<16x128xf32>
    %cst_60 = arith.constant dense<0x7F800000> : vector<16xf32>
    %197 = vector.multi_reduction <minimumf>, %196, %cst_60 [1] : vector<16x128xf32> to vector<16xf32>
    %198 = vector.shape_cast %197 : vector<16xf32> to vector<16x1xf32>
    %199 = arith.fptosi %198 : vector<16x1xf32> to vector<16x1xi32>
    %cst_61 = arith.constant 1.000000e+00 : f32
    %200 = vector.broadcast %cst_61 : f32 to vector<16x128xf32>
    %201 = arith.subf %200, %188 : vector<16x128xf32>
    %202 = vector.broadcast %4 : vector<1x128xf32> to vector<16x128xf32>
    %203 = arith.mulf %201, %202 : vector<16x128xf32>
    %cst_62 = arith.constant 1.000000e+00 : f32
    %204 = vector.broadcast %cst_62 : f32 to vector<16x128xf32>
    %205 = arith.subf %204, %203 : vector<16x128xf32>
    %cst_63 = arith.constant 1.000000e+00 : f32
    %206 = vector.broadcast %cst_63 : f32 to vector<16x128xf32>
    %207 = arith.addf %205, %206 : vector<16x128xf32>
    %208 = vector.broadcast %5 : vector<1x128xf32> to vector<16x128xf32>
    %209 = arith.mulf %207, %208 : vector<16x128xf32>
    %cst_64 = arith.constant 1.000000e+00 : f32
    %210 = vector.broadcast %cst_64 : f32 to vector<16x128xf32>
    %211 = arith.subf %209, %210 : vector<16x128xf32>
    %cst_65 = arith.constant dense<0xFF800000> : vector<16xf32>
    %212 = vector.multi_reduction <maximumf>, %211, %cst_65 [1] : vector<16x128xf32> to vector<16xf32>
    %213 = vector.shape_cast %212 : vector<16xf32> to vector<16x1xf32>
    %214 = vector.broadcast %213 : vector<16x1xf32> to vector<16x128xf32>
    %215 = arith.cmpf oeq, %211, %214 : vector<16x128xf32>
    %cst_66 = arith.constant 1.280000e+02 : f32
    %216 = vector.shape_cast %1 : vector<1x128xf32> to vector<1x128xf32>
    %217 = vector.broadcast %216 : vector<1x128xf32> to vector<16x128xf32>
    %218 = vector.broadcast %cst_66 : f32 to vector<16x128xf32>
    %219 = arith.select %215, %217, %218 : vector<16x128xi1>, vector<16x128xf32>
    %cst_67 = arith.constant dense<0x7F800000> : vector<16xf32>
    %220 = vector.multi_reduction <minimumf>, %219, %cst_67 [1] : vector<16x128xf32> to vector<16xf32>
    %221 = vector.shape_cast %220 : vector<16xf32> to vector<16x1xf32>
    %222 = arith.fptosi %221 : vector<16x1xf32> to vector<16x1xi32>
    %223 = vector.broadcast %0 : vector<1x128xi32> to vector<16x128xi32>
    %224 = vector.broadcast %222 : vector<16x1xi32> to vector<16x128xi32>
    %225 = arith.cmpi eq, %223, %224 : vector<16x128xi32>
    %cst_68 = arith.constant 1.010000e+00 : f32
    %226 = vector.broadcast %cst_68 : f32 to vector<16x128xf32>
    %227 = arith.mulf %211, %226 : vector<16x128xf32>
    %228 = arith.select %225, %227, %211 : vector<16x128xi1>, vector<16x128xf32>
    %cst_69 = arith.constant -1.000000e+00 : f32
    %cst_70 = arith.constant 1.000000e+00 : f32
    %229 = vector.broadcast %cst_69 : f32 to vector<16x128xf32>
    %230 = arith.maximumf %229, %228 : vector<16x128xf32>
    %231 = vector.broadcast %cst_70 : f32 to vector<16x128xf32>
    %232 = arith.minimumf %231, %230 : vector<16x128xf32>
    %cst_71 = arith.constant dense<0xFF800000> : vector<16xf32>
    %233 = vector.multi_reduction <maximumf>, %232, %cst_71 [1] : vector<16x128xf32> to vector<16xf32>
    %234 = vector.shape_cast %233 : vector<16xf32> to vector<16x1xf32>
    %235 = vector.broadcast %234 : vector<16x1xf32> to vector<16x128xf32>
    %236 = arith.cmpf oeq, %232, %235 : vector<16x128xf32>
    %cst_72 = arith.constant 1.280000e+02 : f32
    %237 = vector.shape_cast %1 : vector<1x128xf32> to vector<1x128xf32>
    %238 = vector.broadcast %237 : vector<1x128xf32> to vector<16x128xf32>
    %239 = vector.broadcast %cst_72 : f32 to vector<16x128xf32>
    %240 = arith.select %236, %238, %239 : vector<16x128xi1>, vector<16x128xf32>
    %cst_73 = arith.constant dense<0x7F800000> : vector<16xf32>
    %241 = vector.multi_reduction <minimumf>, %240, %cst_73 [1] : vector<16x128xf32> to vector<16xf32>
    %242 = vector.shape_cast %241 : vector<16xf32> to vector<16x1xf32>
    %243 = arith.fptosi %242 : vector<16x1xf32> to vector<16x1xi32>
    %244 = arith.cmpi ne, %243, %199 : vector<16x1xi32>
    %245 = arith.extui %244 : vector<16x1xi1> to vector<16x1xi32>
    %246 = arith.sitofp %245 : vector<16x1xi32> to vector<16x1xf32>
    %247 = vector.shape_cast %246 : vector<16x1xf32> to vector<1x16x1xf32>
    %cst_74 = arith.constant dense<0.000000e+00> : vector<1xf32>
    %248 = vector.multi_reduction <add>, %247, %cst_74 [1, 2] : vector<1x16x1xf32> to vector<1xf32>
    %249 = vector.shape_cast %248 : vector<1xf32> to vector<1x1x1xf32>
    %250 = vector.extract %249[0, 0, 0] : f32 from vector<1x1x1xf32>
    %251 = arith.addf %142, %250 : f32
    %252 = vector.broadcast %234 : vector<16x1xf32> to vector<16x128xf32>
    %253 = arith.subf %232, %252 : vector<16x128xf32>
    %cst_75 = arith.constant 14.2857141 : f32
    %254 = vector.broadcast %cst_75 : f32 to vector<16x128xf32>
    %255 = arith.mulf %253, %254 : vector<16x128xf32>
    %256 = math.exp %255 : vector<16x128xf32>
    %cst_76 = arith.constant dense<0.000000e+00> : vector<16xf32>
    %257 = vector.multi_reduction <add>, %256, %cst_76 [1] : vector<16x128xf32> to vector<16xf32>
    %258 = vector.shape_cast %257 : vector<16xf32> to vector<16x1xf32>
    %259 = tpu.reciprocal %258 : vector<16x1xf32> -> vector<16x1xf32>
    %260 = vector.shape_cast %259 : vector<16x1xf32> to vector<1x16x1xf32>
    %cst_77 = arith.constant dense<0.000000e+00> : vector<1xf32>
    %261 = vector.multi_reduction <add>, %260, %cst_77 [1, 2] : vector<1x16x1xf32> to vector<1xf32>
    %262 = vector.shape_cast %261 : vector<1xf32> to vector<1x1x1xf32>
    %263 = vector.extract %262[0, 0, 0] : f32 from vector<1x1x1xf32>
    %264 = arith.addf %155, %263 : f32
    %265 = vector.broadcast %0 : vector<1x128xi32> to vector<16x128xi32>
    %266 = vector.broadcast %243 : vector<16x1xi32> to vector<16x128xi32>
    %267 = arith.cmpi eq, %265, %266 : vector<16x128xi32>
    %268 = arith.extui %267 : vector<16x128xi1> to vector<16x128xi32>
    %269 = arith.sitofp %268 : vector<16x128xi32> to vector<16x128xf32>
    %cst_78 = arith.constant dense<0.000000e+00> : vector<1x128xf32>
    %270 = tpu.matmul %3, %269, %cst_78 {dimension_numbers = #tpu.dot_dimension_numbers<[1], [0], [0], [1], [0, 0, 1, 1], [], []>} : vector<1x16xf32>, vector<16x128xf32>, vector<1x128xf32> -> vector<1x128xf32>
    %271 = arith.addf %161, %270 : vector<1x128xf32>
    %272 = arith.mulf %256, %77 : vector<16x128xf32>
    %cst_79 = arith.constant dense<0.000000e+00> : vector<16xf32>
    %273 = vector.multi_reduction <add>, %272, %cst_79 [1] : vector<16x128xf32> to vector<16xf32>
    %274 = vector.shape_cast %273 : vector<16xf32> to vector<16x1xf32>
    %275 = arith.mulf %274, %259 : vector<16x1xf32>
    %276 = vector.shape_cast %275 : vector<16x1xf32> to vector<1x16x1xf32>
    %cst_80 = arith.constant dense<0.000000e+00> : vector<1xf32>
    %277 = vector.multi_reduction <add>, %276, %cst_80 [1, 2] : vector<1x16x1xf32> to vector<1xf32>
    %278 = vector.shape_cast %277 : vector<1xf32> to vector<1x1x1xf32>
    %279 = vector.extract %278[0, 0, 0] : f32 from vector<1x1x1xf32>
    %280 = arith.subf %170, %279 : f32
    %281 = arith.cmpi eq, %243, %31 : vector<16x1xi32>
    %282 = arith.extui %281 : vector<16x1xi1> to vector<16x1xi32>
    %283 = arith.sitofp %282 : vector<16x1xi32> to vector<16x1xf32>
    %284 = vector.shape_cast %283 : vector<16x1xf32> to vector<1x16x1xf32>
    %cst_81 = arith.constant dense<0.000000e+00> : vector<1xf32>
    %285 = vector.multi_reduction <add>, %284, %cst_81 [1, 2] : vector<1x16x1xf32> to vector<1xf32>
    %286 = vector.shape_cast %285 : vector<1xf32> to vector<1x1x1xf32>
    %287 = vector.extract %286[0, 0, 0] : f32 from vector<1x1x1xf32>
    %288 = arith.addf %186, %287 : f32
    %289 = arith.cmpi eq, %243, %66 : vector<16x1xi32>
    %290 = arith.extui %289 : vector<16x1xi1> to vector<16x1xi32>
    %291 = arith.sitofp %290 : vector<16x1xi32> to vector<16x1xf32>
    %292 = vector.shape_cast %291 : vector<16x1xf32> to vector<1x16x1xf32>
    %cst_82 = arith.constant dense<0.000000e+00> : vector<1xf32>
    %293 = vector.multi_reduction <add>, %292, %cst_82 [1, 2] : vector<1x16x1xf32> to vector<1xf32>
    %294 = vector.shape_cast %293 : vector<1xf32> to vector<1x1x1xf32>
    %295 = vector.extract %294[0, 0, 0] : f32 from vector<1x1x1xf32>
    %296 = arith.addf %288, %295 : f32
    %297 = arith.cmpi eq, %134, %243 : vector<16x1xi32>
    %298 = arith.extui %297 : vector<16x1xi1> to vector<16x1xi32>
    %299 = arith.sitofp %298 : vector<16x1xi32> to vector<16x1xf32>
    %300 = vector.shape_cast %299 : vector<16x1xf32> to vector<1x16x1xf32>
    %cst_83 = arith.constant dense<0.000000e+00> : vector<1xf32>
    %301 = vector.multi_reduction <add>, %300, %cst_83 [1, 2] : vector<1x16x1xf32> to vector<1xf32>
    %302 = vector.shape_cast %301 : vector<1xf32> to vector<1x1x1xf32>
    %303 = vector.extract %302[0, 0, 0] : f32 from vector<1x1x1xf32>
    %cst_84 = arith.constant 0.000000e+00 : f32
    %304 = vector.broadcast %cst_84 : f32 to vector<1x128xf32>
    %c0_i32 = arith.constant 0 : i32
    %305 = vector.broadcast %c0_i32 : i32 to vector<1x128xi32>
    %306 = arith.cmpi eq, %2, %305 : vector<1x128xi32>
    %307 = vector.broadcast %280 : f32 to vector<1x128xf32>
    %308 = arith.select %306, %307, %304 : vector<1x128xi1>, vector<1x128xf32>
    %c1_i32 = arith.constant 1 : i32
    %309 = vector.broadcast %c1_i32 : i32 to vector<1x128xi32>
    %310 = arith.cmpi eq, %2, %309 : vector<1x128xi32>
    %311 = vector.broadcast %296 : f32 to vector<1x128xf32>
    %312 = arith.select %310, %311, %308 : vector<1x128xi1>, vector<1x128xf32>
    %c2_i32 = arith.constant 2 : i32
    %313 = vector.broadcast %c2_i32 : i32 to vector<1x128xi32>
    %314 = arith.cmpi eq, %2, %313 : vector<1x128xi32>
    %315 = vector.broadcast %251 : f32 to vector<1x128xf32>
    %316 = arith.select %314, %315, %312 : vector<1x128xi1>, vector<1x128xf32>
    %c3_i32 = arith.constant 3 : i32
    %317 = vector.broadcast %c3_i32 : i32 to vector<1x128xi32>
    %318 = arith.cmpi eq, %2, %317 : vector<1x128xi32>
    %319 = vector.broadcast %264 : f32 to vector<1x128xf32>
    %320 = arith.select %318, %319, %316 : vector<1x128xi1>, vector<1x128xf32>
    %c4_i32 = arith.constant 4 : i32
    %321 = vector.broadcast %c4_i32 : i32 to vector<1x128xi32>
    %322 = arith.cmpi eq, %2, %321 : vector<1x128xi32>
    %323 = vector.broadcast %57 : f32 to vector<1x128xf32>
    %324 = arith.select %322, %323, %320 : vector<1x128xi1>, vector<1x128xf32>
    %c5_i32 = arith.constant 5 : i32
    %325 = vector.broadcast %c5_i32 : i32 to vector<1x128xi32>
    %326 = arith.cmpi eq, %2, %325 : vector<1x128xi32>
    %327 = vector.broadcast %303 : f32 to vector<1x128xf32>
    %328 = arith.select %326, %327, %324 : vector<1x128xi1>, vector<1x128xf32>
    %c0_85 = arith.constant 0 : index
    %c0_86 = arith.constant 0 : index
    %c0_87 = arith.constant 0 : index
    %329 = vector.load %arg5[%c0_85, %c0_86, %c0_87] : memref<1x1x128xf32, #tpu.memory_space<vmem>>, vector<1x1x128xf32>
    %330 = vector.shape_cast %329 : vector<1x1x128xf32> to vector<1x128xf32>
    %331 = vector.shape_cast %328 : vector<1x128xf32> to vector<1x1x128xf32>
    tpu.vector_store %arg5[%c0_85, %c0_86, %c0_87], %331 {strides = array<i32>} : memref<1x1x128xf32, #tpu.memory_space<vmem>>, vector<1x1x128xf32>,
    %c0_88 = arith.constant 0 : index
    %c0_89 = arith.constant 0 : index
    %c0_90 = arith.constant 0 : index
    %332 = vector.load %arg6[%c0_88, %c0_89, %c0_90] : memref<1x1x128xf32, #tpu.memory_space<vmem>>, vector<1x1x128xf32>
    %333 = vector.shape_cast %332 : vector<1x1x128xf32> to vector<1x128xf32>
    %334 = vector.shape_cast %271 : vector<1x128xf32> to vector<1x1x128xf32>
    tpu.vector_store %arg6[%c0_88, %c0_89, %c0_90], %334 {strides = array<i32>} : memref<1x1x128xf32, #tpu.memory_space<vmem>>, vector<1x1x128xf32>,
    %c0_91 = arith.constant 0 : index
    %c0_92 = arith.constant 0 : index
    %c0_93 = arith.constant 0 : index
    %335 = vector.load %arg7[%c0_91, %c0_92, %c0_93] : memref<1x1x128xf32, #tpu.memory_space<vmem>>, vector<1x1x128xf32>
    %336 = vector.shape_cast %335 : vector<1x1x128xf32> to vector<1x128xf32>
    %337 = vector.shape_cast %73 : vector<1x128xf32> to vector<1x1x128xf32>
    tpu.vector_store %arg7[%c0_91, %c0_92, %c0_93], %337 {strides = array<i32>} : memref<1x1x128xf32, #tpu.memory_space<vmem>>, vector<1x1x128xf32>,
    return
  }
  func.func @transform_0(%arg0: i32) -> (i32, i32, i32) {
    %c0_i32 = arith.constant 0 : i32
    %c0_i32_0 = arith.constant 0 : i32
    %c0_i32_1 = arith.constant 0 : i32
    return %c0_i32, %arg0, %c0_i32_0 : i32, i32, i32
  }
  func.func @transform_1(%arg0: i32) -> (i32, i32, i32) {
    %c0_i32 = arith.constant 0 : i32
    %c0_i32_0 = arith.constant 0 : i32
    %c0_i32_1 = arith.constant 0 : i32
    return %c0_i32, %arg0, %c0_i32_0 : i32, i32, i32
  }
  func.func @transform_2(%arg0: i32) -> (i32, i32) {
    %c0_i32 = arith.constant 0 : i32
    %c0_i32_0 = arith.constant 0 : i32
    %c0_i32_1 = arith.constant 0 : i32
    return %c0_i32, %c0_i32_0 : i32, i32
  }
  func.func @transform_3(%arg0: i32) -> (i32, i32) {
    %c0_i32 = arith.constant 0 : i32
    %c0_i32_0 = arith.constant 0 : i32
    %c0_i32_1 = arith.constant 0 : i32
    return %c0_i32, %c0_i32_0 : i32, i32
  }
  func.func @transform_4(%arg0: i32) -> (i32, i32, i32) {
    %c0_i32 = arith.constant 0 : i32
    %c0_i32_0 = arith.constant 0 : i32
    %c0_i32_1 = arith.constant 0 : i32
    return %arg0, %c0_i32, %c0_i32_0 : i32, i32, i32
  }
  func.func @transform_5(%arg0: i32) -> (i32, i32, i32) {
    %c0_i32 = arith.constant 0 : i32
    %c0_i32_0 = arith.constant 0 : i32
    %c0_i32_1 = arith.constant 0 : i32
    return %arg0, %c0_i32, %c0_i32_0 : i32, i32, i32
  }
  func.func @transform_6(%arg0: i32) -> (i32, i32, i32) {
    %c0_i32 = arith.constant 0 : i32
    %c0_i32_0 = arith.constant 0 : i32
    %c0_i32_1 = arith.constant 0 : i32
    return %arg0, %c0_i32, %c0_i32_0 : i32, i32, i32
  }
}

</mosaic_0001>

<llo_original>
// kernel: tpu_custom_call.1
$region0: #{tpu_custom_call.1}
  #allocation0 [shape = 'u32[]', space=smem, size = 0x4, offset = 0x4, fixed_abs, tag = 'smem constant byte address 0x4 - core index']
  #allocation1 [shape = 'u32[144,128]{1,0:T(1,128)}', space=vmem, size = 0x12000, scoped, tag = 'internal scratch']
  %s0 = inlined_call_operand.hbm [shape: f32[2,16,128], index: 0, kind: input, shape index: {}]
  %s1 = inlined_call_operand.hbm [shape: f32[2,16,128], index: 1, kind: input, shape index: {}]
  %s2 = inlined_call_operand.vmem [shape: f32[1,128], index: 2, kind: input, shape index: {}]
  %s3 = inlined_call_operand.vmem [shape: f32[1,128], index: 3, kind: input, shape index: {}]
  %s4 = inlined_call_operand.hbm [shape: f32[1,1,128], index: 4, kind: output, shape index: {0}]
  %s5 = inlined_call_operand.hbm [shape: f32[1,1,128], index: 5, kind: output, shape index: {1}]
  %s6 = inlined_call_operand.hbm [shape: f32[1,1,128], index: 6, kind: output, shape index: {2}]
  %7 = xla_tuple %s4, %s5, %s6
  %s8 = sld [smem:[#allocation0]]
  $region50: #{tpu_custom_call.1} parent=0
    _
  %s10 = ssub.s32 1, %s8
  %s11 = scalar_select 0, %s10, %s8
  $region1: #{tpu_custom_call.1} parent=0
    #allocation2 [shape = 'u8[16384]{0}', space=vmem, size = 0x4000, scoped, tag = 'input window, operand 0, single buffered']
    #allocation3 [shape = 's32[1]{0}', space=sflag, size = 0x4, scoped, tag = 'scoped memory for tpu_custom_call.1']
    #allocation4 [shape = 's32[1]{0}', space=sflag, size = 0x4, scoped, tag = 'scoped memory for tpu_custom_call.1']
    #allocation5 [shape = 'u8[16384]{0}', space=vmem, size = 0x4000, scoped, tag = 'input window, operand 1, single buffered']
    #allocation6 [shape = 's32[1]{0}', space=sflag, size = 0x4, scoped, tag = 'scoped memory for tpu_custom_call.1']
    #allocation7 [shape = 'u8[512]{0}', space=vmem, size = 0x400, scoped, tag = 'output window, operand 0, single buffered']
    #allocation8 [shape = 'u8[512]{0}', space=vmem, size = 0x400, scoped, tag = 'output window, operand 1, single buffered']
    #allocation9 [shape = 's32[1]{0}', space=sflag, size = 0x4, scoped, tag = 'scoped memory for tpu_custom_call.1']
    #allocation10 [shape = 'u8[512]{0}', space=vmem, size = 0x400, scoped, tag = 'output window, operand 2, single buffered']
    %12 = vsyncpa [#allocation3], 0
    %13 = vsyncpa [#allocation6], 0
    %14 = vsyncpa [#allocation4], 0
    %15 = vsyncpa [#allocation9], 0
    // Predicated region
    $region2: #{tpu_custom_call.1} parent=1 // pred_check
      _
    $region3: #{tpu_custom_call.1} parent=1 // pred_check_branch
      %17 = sbr.rel (0) target = $region5
    $region4: #{tpu_custom_call.1} parent=1 // pred_region
      %s19 = ssub.s32 512, 512
      %20 = vsyncadd [#allocation3], %s19
      %s21 = sshll.u32 [#allocation2], 4
      %s22 = int_to_ptr.vmem [resolvable:$true] %s21
      %27 = dma.hbm_to_vmem [thread:$0]  %s0, 512, %s22, [#allocation3], 128, 128, 8
    $region5: #{tpu_custom_call.1} parent=1 // pred_fallthru
      _
    // Predicated region
    $region6: #{tpu_custom_call.1} parent=1 // pred_check
      _
    $region7: #{tpu_custom_call.1} parent=1 // pred_check_branch
      %29 = sbr.rel (0) target = $region9
    $region8: #{tpu_custom_call.1} parent=1 // pred_region
      %s31 = ssub.s32 512, 512
      %32 = vsyncadd [#allocation6], %s31
      %s33 = sshll.u32 [#allocation5], 4
      %s34 = int_to_ptr.vmem [resolvable:$true] %s33
      %39 = dma.hbm_to_vmem [thread:$0]  %s1, 512, %s34, [#allocation6], 128, 128, 8
    $region9: #{tpu_custom_call.1} parent=1 // pred_fallthru
      _
    // Predicated region
    $region10: #{tpu_custom_call.1} parent=1 // pred_check
      _
    $region11: #{tpu_custom_call.1} parent=1 // pred_check_branch
      %41 = sbr.rel (0) target = $region13
    $region12: #{tpu_custom_call.1} parent=1 // pred_region
      _
    $region13: #{tpu_custom_call.1} parent=1 // pred_fallthru
      _
    // Predicated region
    $region14: #{tpu_custom_call.1} parent=1 // pred_check
      _
    $region15: #{tpu_custom_call.1} parent=1 // pred_check_branch
      %43 = sbr.rel (0) target = $region17
    $region16: #{tpu_custom_call.1} parent=1 // pred_region
      _
    $region17: #{tpu_custom_call.1} parent=1 // pred_fallthru
      _
    // Predicated region
    $region18: #{tpu_custom_call.1} parent=1 // pred_check
      _
    $region19: #{tpu_custom_call.1} parent=1 // pred_check_branch
      %45 = sbr.rel (0) target = $region21
    $region20: #{tpu_custom_call.1} parent=1 // pred_region
      %46 = dma.done [#allocation3], 512
    $region21: #{tpu_custom_call.1} parent=1 // pred_fallthru
      _
    // Predicated region
    $region22: #{tpu_custom_call.1} parent=1 // pred_check
      _
    $region23: #{tpu_custom_call.1} parent=1 // pred_check_branch
      %48 = sbr.rel (0) target = $region25
    $region24: #{tpu_custom_call.1} parent=1 // pred_region
      %49 = dma.done [#allocation6], 512
    $region25: #{tpu_custom_call.1} parent=1 // pred_fallthru
      _
    %v50 = vlaneseq
    %v51 = vand.u32 %v50, 127
    %v52 = vcvt.s32.f32 %v51
    %v53 = vld [vmem:[%s2] sm:$0x1]
    %v54 = vld [vmem:[%s3] sm:$0x1]
    %v55 = vld [vmem:[#allocation2] sm:$0xff]
    %v56 = vld [vmem:[#allocation2 + $0x8] sm:$0xff]
    %v57 = vmul.f32 %v55, 10.0
    %v58 = vmul.f32 %v56, 10.0
    %59 = vmax.xlane.f32.xlu0 %v57
    %v60 = vpop.xlane.xlu0 %59
    %61 = vmax.xlane.f32.xlu0 %v58
    %v62 = vpop.xlane.xlu0 %61
    %v63 = vsub.f32 %v57, %v60
    %v64 = vsub.f32 %v58, %v62
    %v65 = vmul.f32 %v63, 1.442695
    %v66 = vpow.pop %v65
    %v67 = vmul.f32 %v64, 1.442695
    %v68 = vpow.pop %v67
    %69 = vadd.xlane.f32.xlu0 %v66
    %v70 = vpop.xlane.xlu0 %69
    %71 = vadd.xlane.f32.xlu0 %v68
    %v72 = vpop.xlane.xlu0 %71
    %v73 = vrcp.pop %v70
    %v74 = vrcp.pop %v72
    %vm75 = vcmask 7168
    %v76 = vsel %vm75, %v73, 0.0
    %v77 = vsel %vm75, %v74, 0.0
    %v78 = vadd.f32 %v76, %v77
    %79 = vadd.xlane.f32.xlu0 %v78
    %v80 = vpop.xlane.xlu0 %79
    %v81 = vrot.slane %v80, 4
    %v82 = vadd.f32 %v80, %v81
    %v83 = vrot.slane %v82, 2
    %v84 = vadd.f32 %v82, %v83
    %v85 = vrot.slane %v84, 1
    %v86 = vadd.f32 %v84, %v85
    %s87 = vtos %v86
    %s88 = sadd.f32 %s87, 0.0
    %vm89 = vcmp.eq.f32.partialorder %v57, %v60
    %vm90 = vcmp.eq.f32.partialorder %v58, %v62
    %v91 = vsel %vm89, %v52, 128.0
    %v92 = vsel %vm90, %v52, 128.0
    %93 = vmin.xlane.f32.xlu0 %v91
    %v94 = vpop.xlane.xlu0 %93
    %95 = vmin.xlane.f32.xlu0 %v92
    %v96 = vpop.xlane.xlu0 %95
    %v97 = vcvt.f32.s32.to.zero.pseudo %v94
    %v98 = vcvt.f32.s32.to.zero.pseudo %v96
    %vm99 = vcmp.eq.s32.totalorder %v51, %v97
    %vm100 = vcmp.eq.s32.totalorder %v51, %v98
    %v101 = vsel %vm99, 1, 0
    %v102 = vsel %vm100, 1, 0
    %v103 = vcvt.s32.f32 %v101
    %v104 = vcvt.s32.f32 %v102
    %v105 = vlog2.pop %v70
    %v106 = vmul.f32 %v105, 0.6931472
    %v107 = vlog2.pop %v72
    %v108 = vmul.f32 %v107, 0.6931472
    %v109 = vsub.f32 %v63, %v106
    %v110 = vsub.f32 %v64, %v108
    %s111 = scalar_lea.vmem [#allocation2], 16
    %v112 = vld [vmem:[%s111] sm:$0xff]
    %v113 = vld [vmem:[%s111 + $0x8] sm:$0xff]
    %v114 = vmul.f32 %v112, 10.0
    %v115 = vmul.f32 %v113, 10.0
    %116 = vmax.xlane.f32.xlu0 %v114
    %v117 = vpop.xlane.xlu0 %116
    %118 = vmax.xlane.f32.xlu0 %v115
    %v119 = vpop.xlane.xlu0 %118
    %v120 = vsub.f32 %v114, %v117
    %v121 = vsub.f32 %v115, %v119
    %v122 = vmul.f32 %v120, 1.442695
    %v123 = vpow.pop %v122
    %v124 = vmul.f32 %v121, 1.442695
    %v125 = vpow.pop %v124
    %126 = vadd.xlane.f32.xlu0 %v123
    %v127 = vpop.xlane.xlu0 %126
    %128 = vadd.xlane.f32.xlu0 %v125
    %v129 = vpop.xlane.xlu0 %128
    %v130 = vrcp.pop %v127
    %v131 = vrcp.pop %v129
    %v132 = vsel %vm75, %v130, 0.0
    %v133 = vsel %vm75, %v131, 0.0
    %v134 = vadd.f32 %v132, %v133
    %135 = vadd.xlane.f32.xlu0 %v134
    %v136 = vpop.xlane.xlu0 %135
    %v137 = vrot.slane %v136, 4
    %v138 = vadd.f32 %v136, %v137
    %v139 = vrot.slane %v138, 2
    %v140 = vadd.f32 %v138, %v139
    %v141 = vrot.slane %v140, 1
    %v142 = vadd.f32 %v140, %v141
    %s143 = vtos %v142
    %s144 = sadd.f32 %s88, %s143
    %vm145 = vcmp.eq.f32.partialorder %v114, %v117
    %vm146 = vcmp.eq.f32.partialorder %v115, %v119
    %v147 = vsel %vm145, %v52, 128.0
    %v148 = vsel %vm146, %v52, 128.0
    %149 = vmin.xlane.f32.xlu0 %v147
    %v150 = vpop.xlane.xlu0 %149
    %151 = vmin.xlane.f32.xlu0 %v148
    %v152 = vpop.xlane.xlu0 %151
    %v153 = vcvt.f32.s32.to.zero.pseudo %v150
    %v154 = vcvt.f32.s32.to.zero.pseudo %v152
    %vm155 = vcmp.eq.s32.totalorder %v51, %v153
    %vm156 = vcmp.eq.s32.totalorder %v51, %v154
    %v157 = vsel %vm155, 1, 0
    %v158 = vsel %vm156, 1, 0
    %v159 = vcvt.s32.f32 %v157
    %v160 = vcvt.s32.f32 %v158
    %vm161 = vcmask 130048
    %v163 = vsel %vm161, 1.0, 0
    %165 = vmatprep.subr.mxu0 0.0
    %166 = vmatpush1.msra.mxu0 %v159
    %167 = vmatprep.subr.mxu0 0.0
    %168 = vmatpush1.msra.mxu0 %v160
    %169 = vmatprep.subr.mxu0 0.0
    %170 = vmatpush1.msra.mxu0 0.0
    %171 = vmatprep.subr.mxu0 0.0
    %172 = vmatpush1.msra.mxu0 0.0
    %173 = vmatprep.subr.mxu0 0.0
    %174 = vmatpush1.msra.mxu0 0.0
    %175 = vmatprep.subr.mxu0 0.0
    %176 = vmatpush1.msra.mxu0 0.0
    %177 = vmatprep.subr.mxu0 0.0
    %178 = vmatpush1.msra.mxu0 0.0
    %179 = vmatprep.subr.mxu0 0.0
    %180 = vmatpush1.msra.mxu0 0.0
    %181 = vmatprep.subr.mxu0 0.0
    %182 = vmatpush1.msra.mxu0 0.0
    %183 = vmatprep.subr.mxu0 0.0
    %184 = vmatpush1.msra.mxu0 0.0
    %185 = vmatprep.subr.mxu0 0.0
    %186 = vmatpush1.msra.mxu0 0.0
    %187 = vmatprep.subr.mxu0 0.0
    %188 = vmatpush1.msra.mxu0 0.0
    %189 = vmatprep.subr.mxu0 0.0
    %190 = vmatpush1.msra.mxu0 0.0
    %191 = vmatprep.subr.mxu0 0.0
    %192 = vmatpush1.msra.mxu0 0.0
    %193 = vmatprep.subr.mxu0 0.0
    %194 = vmatpush1.msra.mxu0 0.0
    %195 = vmatprep.subr.mxu0 0.0
    %196 = vmatpush1.msra.mxu0 0.0
    %197 = vmatprep.subr.mxu0 0.0
    %198 = vmatpush1.msra.mxu0 0.0
    %199 = vmatprep.subr.mxu0 0.0
    %200 = vmatpush1.msra.mxu0 0.0
    %201 = vmatprep.subr.mxu0 0.0
    %202 = vmatpush1.msra.mxu0 0.0
    %203 = vmatprep.subr.mxu0 0.0
    %204 = vmatpush1.msra.mxu0 0.0
    %205 = vmatprep.subr.mxu0 0.0
    %206 = vmatpush1.msra.mxu0 0.0
    %207 = vmatprep.subr.mxu0 0.0
    %208 = vmatpush1.msra.mxu0 0.0
    %209 = vmatprep.subr.mxu0 0.0
    %210 = vmatpush1.msra.mxu0 0.0
    %211 = vmatprep.subr.mxu0 0.0
    %212 = vmatpush1.msra.mxu0 0.0
    %213 = vmatprep.subr.mxu0 0.0
    %214 = vmatpush1.msra.mxu0 0.0
    %215 = vmatprep.subr.mxu0 0.0
    %216 = vmatpush1.msra.mxu0 0.0
    %217 = vmatprep.subr.mxu0 0.0
    %218 = vmatpush1.msra.mxu0 0.0
    %219 = vmatprep.subr.mxu0 0.0
    %220 = vmatpush1.msra.mxu0 0.0
    %221 = vmatprep.subr.mxu0 0.0
    %222 = vmatpush1.msra.mxu0 0.0
    %223 = vmatprep.subr.mxu0 0.0
    %224 = vmatpush1.msra.mxu0 0.0
    %225 = vmatprep.subr.mxu0 0.0
    %226 = vmatpush1.msra.mxu0 0.0
    %227 = vmatprep.subr.mxu0 0.0
    %228 = vmatpush1.msra.mxu0 0.0
    %229 = vmatprep.mubr.f32.mxu0 0.0
    %230 = vmatmul.mubr.f32.gmra.mrb[0].mxu0 %v163
    %v231 = vpop.f32.mrb[0].mxu0
    %v232 = vadd.f32 0.0, %v231
    %v233 = vpop.f32.mrb[0].mxu0
    %234 = vdwg.mxu0
    %235 = vmatprep.subr.mxu0 0.0
    %236 = vmatpush1.msra.mxu0 %v103
    %237 = vmatprep.subr.mxu0 0.0
    %238 = vmatpush1.msra.mxu0 %v104
    %239 = vmatprep.subr.mxu0 0.0
    %240 = vmatpush1.msra.mxu0 0.0
    %241 = vmatprep.subr.mxu0 0.0
    %242 = vmatpush1.msra.mxu0 0.0
    %243 = vmatprep.subr.mxu0 0.0
    %244 = vmatpush1.msra.mxu0 0.0
    %245 = vmatprep.subr.mxu0 0.0
    %246 = vmatpush1.msra.mxu0 0.0
    %247 = vmatprep.subr.mxu0 0.0
    %248 = vmatpush1.msra.mxu0 0.0
    %249 = vmatprep.subr.mxu0 0.0
    %250 = vmatpush1.msra.mxu0 0.0
    %251 = vmatprep.subr.mxu0 0.0
    %252 = vmatpush1.msra.mxu0 0.0
    %253 = vmatprep.subr.mxu0 0.0
    %254 = vmatpush1.msra.mxu0 0.0
    %255 = vmatprep.subr.mxu0 0.0
    %256 = vmatpush1.msra.mxu0 0.0
    %257 = vmatprep.subr.mxu0 0.0
    %258 = vmatpush1.msra.mxu0 0.0
    %259 = vmatprep.subr.mxu0 0.0
    %260 = vmatpush1.msra.mxu0 0.0
    %261 = vmatprep.subr.mxu0 0.0
    %262 = vmatpush1.msra.mxu0 0.0
    %263 = vmatprep.subr.mxu0 0.0
    %264 = vmatpush1.msra.mxu0 0.0
    %265 = vmatprep.subr.mxu0 0.0
    %266 = vmatpush1.msra.mxu0 0.0
    %267 = vmatprep.subr.mxu0 0.0
    %268 = vmatpush1.msra.mxu0 0.0
    %269 = vmatprep.subr.mxu0 0.0
    %270 = vmatpush1.msra.mxu0 0.0
    %271 = vmatprep.subr.mxu0 0.0
    %272 = vmatpush1.msra.mxu0 0.0
    %273 = vmatprep.subr.mxu0 0.0
    %274 = vmatpush1.msra.mxu0 0.0
    %275 = vmatprep.subr.mxu0 0.0
    %276 = vmatpush1.msra.mxu0 0.0
    %277 = vmatprep.subr.mxu0 0.0
    %278 = vmatpush1.msra.mxu0 0.0
    %279 = vmatprep.subr.mxu0 0.0
    %280 = vmatpush1.msra.mxu0 0.0
    %281 = vmatprep.subr.mxu0 0.0
    %282 = vmatpush1.msra.mxu0 0.0
    %283 = vmatprep.subr.mxu0 0.0
    %284 = vmatpush1.msra.mxu0 0.0
    %285 = vmatprep.subr.mxu0 0.0
    %286 = vmatpush1.msra.mxu0 0.0
    %287 = vmatprep.subr.mxu0 0.0
    %288 = vmatpush1.msra.mxu0 0.0
    %289 = vmatprep.subr.mxu0 0.0
    %290 = vmatpush1.msra.mxu0 0.0
    %291 = vmatprep.subr.mxu0 0.0
    %292 = vmatpush1.msra.mxu0 0.0
    %293 = vmatprep.subr.mxu0 0.0
    %294 = vmatpush1.msra.mxu0 0.0
    %295 = vmatprep.subr.mxu0 0.0
    %296 = vmatpush1.msra.mxu0 0.0
    %297 = vmatprep.subr.mxu0 0.0
    %298 = vmatpush1.msra.mxu0 0.0
    %299 = vmatprep.mubr.f32.mxu0 0.0
    %300 = vmatmul.mubr.f32.gmra.mrb[0].mxu0 %v163
    %v301 = vpop.f32.mrb[0].mxu0
    %v302 = vadd.f32 %v232, %v301
    %v303 = vpop.f32.mrb[0].mxu0
    %304 = vdwg.mxu0
    %v305 = vlog2.pop %v127
    %v306 = vmul.f32 %v305, 0.6931472
    %v307 = vlog2.pop %v129
    %v308 = vmul.f32 %v307, 0.6931472
    %v309 = vsub.f32 %v120, %v306
    %v310 = vsub.f32 %v121, %v308
    %v311 = vadd.f32 %v109, %v309
    %v312 = vadd.f32 %v110, %v310
    %v313 = vld [vmem:[#allocation5] sm:$0xff]
    %v314 = vld [vmem:[#allocation5 + $0x8] sm:$0xff]
    %315 = vmax.xlane.f32.xlu0 %v313
    %v316 = vpop.xlane.xlu0 %315
    %317 = vmax.xlane.f32.xlu0 %v314
    %v318 = vpop.xlane.xlu0 %317
    %vm319 = vcmp.eq.f32.partialorder %v313, %v316
    %vm320 = vcmp.eq.f32.partialorder %v314, %v318
    %v321 = vsel %vm319, %v52, 128.0
    %v322 = vsel %vm320, %v52, 128.0
    %323 = vmin.xlane.f32.xlu0 %v321
    %v324 = vpop.xlane.xlu0 %323
    %325 = vmin.xlane.f32.xlu0 %v322
    %v326 = vpop.xlane.xlu0 %325
    %v327 = vcvt.f32.s32.to.zero.pseudo %v324
    %v328 = vcvt.f32.s32.to.zero.pseudo %v326
    %v329 = vsub.f32 1.0, %v313
    %v330 = vsub.f32 1.0, %v314
    %v332 = vlaneseq
    %v333 = vshrl.u32 %v332, 7
    %v334 = vsub.s32 0, %v333
    %v335 = vrot.slane %v53, %v334
    %v337 = vmul.f32 %v329, %v335
    %v338 = vmul.f32 %v330, %v335
    %v339 = vsub.f32 1.0, %v337
    %v340 = vsub.f32 1.0, %v338
    %v341 = vadd.f32 %v339, 1.0
    %v342 = vadd.f32 %v340, 1.0
    %v344 = vlaneseq
    %v345 = vshrl.u32 %v344, 7
    %v346 = vsub.s32 0, %v345
    %v347 = vrot.slane %v54, %v346
    %v349 = vmul.f32 %v341, %v347
    %v350 = vmul.f32 %v342, %v347
    %v351 = vsub.f32 %v349, 1.0
    %v352 = vsub.f32 %v350, 1.0
    %353 = vmax.xlane.f32.xlu0 %v351
    %v354 = vpop.xlane.xlu0 %353
    %355 = vmax.xlane.f32.xlu0 %v352
    %v356 = vpop.xlane.xlu0 %355
    %vm357 = vcmp.eq.f32.partialorder %v351, %v354
    %vm358 = vcmp.eq.f32.partialorder %v352, %v356
    %v359 = vsel %vm357, %v52, 128.0
    %v360 = vsel %vm358, %v52, 128.0
    %361 = vmin.xlane.f32.xlu0 %v359
    %v362 = vpop.xlane.xlu0 %361
    %363 = vmin.xlane.f32.xlu0 %v360
    %v364 = vpop.xlane.xlu0 %363
    %v365 = vcvt.f32.s32.to.zero.pseudo %v362
    %v366 = vcvt.f32.s32.to.zero.pseudo %v364
    %vm367 = vcmp.eq.s32.totalorder %v51, %v365
    %vm368 = vcmp.eq.s32.totalorder %v51, %v366
    %v369 = vmul.f32 %v351, 1.01
    %v370 = vmul.f32 %v352, 1.01
    %v371 = vsel %vm367, %v369, %v351
    %v372 = vsel %vm368, %v370, %v352
    %v373 = vmax.f32 %v371, -1.0
    %v374 = vmax.f32 %v372, -1.0
    %v375 = vmin.f32 %v373, 1.0
    %v376 = vmin.f32 %v374, 1.0
    %377 = vmax.xlane.f32.xlu0 %v375
    %v378 = vpop.xlane.xlu0 %377
    %379 = vmax.xlane.f32.xlu0 %v376
    %v380 = vpop.xlane.xlu0 %379
    %vm381 = vcmp.eq.f32.partialorder %v375, %v378
    %vm382 = vcmp.eq.f32.partialorder %v376, %v380
    %v383 = vsel %vm381, %v52, 128.0
    %v384 = vsel %vm382, %v52, 128.0
    %385 = vmin.xlane.f32.xlu0 %v383
    %v386 = vpop.xlane.xlu0 %385
    %387 = vmin.xlane.f32.xlu0 %v384
    %v388 = vpop.xlane.xlu0 %387
    %v389 = vcvt.f32.s32.to.zero.pseudo %v386
    %v390 = vcvt.f32.s32.to.zero.pseudo %v388
    %vm391 = vcmp.ne.s32.totalorder %v389, %v327
    %vm392 = vcmp.ne.s32.totalorder %v390, %v328
    %v393 = vsel %vm391, 1, 0
    %v394 = vsel %vm392, 1, 0
    %v395 = vcvt.s32.f32 %v393
    %v396 = vcvt.s32.f32 %v394
    %v397 = vsel %vm75, %v395, 0.0
    %v398 = vsel %vm75, %v396, 0.0
    %v399 = vadd.f32 %v397, %v398
    %400 = vadd.xlane.f32.xlu0 %v399
    %v401 = vpop.xlane.xlu0 %400
    %v402 = vrot.slane %v401, 4
    %v403 = vadd.f32 %v401, %v402
    %v404 = vrot.slane %v403, 2
    %v405 = vadd.f32 %v403, %v404
    %v406 = vrot.slane %v405, 1
    %v407 = vadd.f32 %v405, %v406
    %s408 = vtos %v407
    %s409 = sadd.f32 %s408, 0.0
    %v410 = vsub.f32 %v375, %v378
    %v411 = vsub.f32 %v376, %v380
    %v412 = vmul.f32 %v410, 14.285714
    %v413 = vmul.f32 %v411, 14.285714
    %v414 = vmul.f32 %v412, 1.442695
    %v415 = vpow.pop %v414
    %v416 = vmul.f32 %v413, 1.442695
    %v417 = vpow.pop %v416
    %418 = vadd.xlane.f32.xlu0 %v415
    %v419 = vpop.xlane.xlu0 %418
    %420 = vadd.xlane.f32.xlu0 %v417
    %v421 = vpop.xlane.xlu0 %420
    %v422 = vrcp.pop %v419
    %v423 = vrcp.pop %v421
    %v424 = vsel %vm75, %v422, 0.0
    %v425 = vsel %vm75, %v423, 0.0
    %v426 = vadd.f32 %v424, %v425
    %427 = vadd.xlane.f32.xlu0 %v426
    %v428 = vpop.xlane.xlu0 %427
    %v429 = vrot.slane %v428, 4
    %v430 = vadd.f32 %v428, %v429
    %v431 = vrot.slane %v430, 2
    %v432 = vadd.f32 %v430, %v431
    %v433 = vrot.slane %v432, 1
    %v434 = vadd.f32 %v432, %v433
    %s435 = vtos %v434
    %s436 = sadd.f32 %s435, 0.0
    %vm437 = vcmp.eq.s32.totalorder %v51, %v389
    %vm438 = vcmp.eq.s32.totalorder %v51, %v390
    %v439 = vsel %vm437, 1, 0
    %v440 = vsel %vm438, 1, 0
    %v441 = vcvt.s32.f32 %v439
    %v442 = vcvt.s32.f32 %v440
    %v443 = vmul.f32 %v415, %v311
    %v444 = vmul.f32 %v417, %v312
    %445 = vadd.xlane.f32.xlu0 %v443
    %v446 = vpop.xlane.xlu0 %445
    %447 = vadd.xlane.f32.xlu0 %v444
    %v448 = vpop.xlane.xlu0 %447
    %v449 = vmul.f32 %v446, %v422
    %v450 = vmul.f32 %v448, %v423
    %v451 = vsel %vm75, %v449, 0.0
    %v452 = vsel %vm75, %v450, 0.0
    %v453 = vadd.f32 %v451, %v452
    %454 = vadd.xlane.f32.xlu0 %v453
    %v455 = vpop.xlane.xlu0 %454
    %v456 = vrot.slane %v455, 4
    %v457 = vadd.f32 %v455, %v456
    %v458 = vrot.slane %v457, 2
    %v459 = vadd.f32 %v457, %v458
    %v460 = vrot.slane %v459, 1
    %v461 = vadd.f32 %v459, %v460
    %s462 = vtos %v461
    %s463 = ssub.f32 0.0, %s462
    %vm464 = vcmp.eq.s32.totalorder %v389, %v97
    %vm465 = vcmp.eq.s32.totalorder %v390, %v98
    %v466 = vsel %vm464, 1, 0
    %v467 = vsel %vm465, 1, 0
    %v468 = vcvt.s32.f32 %v466
    %v469 = vcvt.s32.f32 %v467
    %v470 = vsel %vm75, %v468, 0.0
    %v471 = vsel %vm75, %v469, 0.0
    %v472 = vadd.f32 %v470, %v471
    %473 = vadd.xlane.f32.xlu0 %v472
    %v474 = vpop.xlane.xlu0 %473
    %v475 = vrot.slane %v474, 4
    %v476 = vadd.f32 %v474, %v475
    %v477 = vrot.slane %v476, 2
    %v478 = vadd.f32 %v476, %v477
    %v479 = vrot.slane %v478, 1
    %v480 = vadd.f32 %v478, %v479
    %s481 = vtos %v480
    %s482 = sadd.f32 %s481, 0.0
    %vm483 = vcmp.eq.s32.totalorder %v389, %v153
    %vm484 = vcmp.eq.s32.totalorder %v390, %v154
    %v485 = vsel %vm483, 1, 0
    %v486 = vsel %vm484, 1, 0
    %v487 = vcvt.s32.f32 %v485
    %v488 = vcvt.s32.f32 %v486
    %v489 = vsel %vm75, %v487, 0.0
    %v490 = vsel %vm75, %v488, 0.0
    %v491 = vadd.f32 %v489, %v490
    %492 = vadd.xlane.f32.xlu0 %v491
    %v493 = vpop.xlane.xlu0 %492
    %v494 = vrot.slane %v493, 4
    %v495 = vadd.f32 %v493, %v494
    %v496 = vrot.slane %v495, 2
    %v497 = vadd.f32 %v495, %v496
    %v498 = vrot.slane %v497, 1
    %v499 = vadd.f32 %v497, %v498
    %s500 = vtos %v499
    %s501 = sadd.f32 %s482, %s500
    %s502 = scalar_lea.vmem [#allocation5], 16
    %v503 = vld [vmem:[%s502] sm:$0xff]
    %v504 = vld [vmem:[%s502 + $0x8] sm:$0xff]
    %505 = vmax.xlane.f32.xlu0 %v503
    %v506 = vpop.xlane.xlu0 %505
    %507 = vmax.xlane.f32.xlu0 %v504
    %v508 = vpop.xlane.xlu0 %507
    %vm509 = vcmp.eq.f32.partialorder %v503, %v506
    %vm510 = vcmp.eq.f32.partialorder %v504, %v508
    %v511 = vsel %vm509, %v52, 128.0
    %v512 = vsel %vm510, %v52, 128.0
    %513 = vmin.xlane.f32.xlu0 %v511
    %v514 = vpop.xlane.xlu0 %513
    %515 = vmin.xlane.f32.xlu0 %v512
    %v516 = vpop.xlane.xlu0 %515
    %v517 = vcvt.f32.s32.to.zero.pseudo %v514
    %v518 = vcvt.f32.s32.to.zero.pseudo %v516
    %v519 = vsub.f32 1.0, %v503
    %v520 = vsub.f32 1.0, %v504
    %v521 = vmul.f32 %v519, %v335
    %v522 = vmul.f32 %v520, %v335
    %v523 = vsub.f32 1.0, %v521
    %v524 = vsub.f32 1.0, %v522
    %v525 = vadd.f32 %v523, 1.0
    %v526 = vadd.f32 %v524, 1.0
    %v527 = vmul.f32 %v525, %v347
    %v528 = vmul.f32 %v526, %v347
    %v529 = vsub.f32 %v527, 1.0
    %v530 = vsub.f32 %v528, 1.0
    %531 = vmax.xlane.f32.xlu0 %v529
    %v532 = vpop.xlane.xlu0 %531
    %533 = vmax.xlane.f32.xlu0 %v530
    %v534 = vpop.xlane.xlu0 %533
    %vm535 = vcmp.eq.f32.partialorder %v529, %v532
    %vm536 = vcmp.eq.f32.partialorder %v530, %v534
    %v537 = vsel %vm535, %v52, 128.0
    %v538 = vsel %vm536, %v52, 128.0
    %539 = vmin.xlane.f32.xlu0 %v537
    %v540 = vpop.xlane.xlu0 %539
    %541 = vmin.xlane.f32.xlu0 %v538
    %v542 = vpop.xlane.xlu0 %541
    %v543 = vcvt.f32.s32.to.zero.pseudo %v540
    %v544 = vcvt.f32.s32.to.zero.pseudo %v542
    %vm545 = vcmp.eq.s32.totalorder %v51, %v543
    %vm546 = vcmp.eq.s32.totalorder %v51, %v544
    %v547 = vmul.f32 %v529, 1.01
    %v548 = vmul.f32 %v530, 1.01
    %v549 = vsel %vm545, %v547, %v529
    %v550 = vsel %vm546, %v548, %v530
    %v551 = vmax.f32 %v549, -1.0
    %v552 = vmax.f32 %v550, -1.0
    %v553 = vmin.f32 %v551, 1.0
    %v554 = vmin.f32 %v552, 1.0
    %555 = vmax.xlane.f32.xlu0 %v553
    %v556 = vpop.xlane.xlu0 %555
    %557 = vmax.xlane.f32.xlu0 %v554
    %v558 = vpop.xlane.xlu0 %557
    %vm559 = vcmp.eq.f32.partialorder %v553, %v556
    %vm560 = vcmp.eq.f32.partialorder %v554, %v558
    %v561 = vsel %vm559, %v52, 128.0
    %v562 = vsel %vm560, %v52, 128.0
    %563 = vmin.xlane.f32.xlu0 %v561
    %v564 = vpop.xlane.xlu0 %563
    %565 = vmin.xlane.f32.xlu0 %v562
    %v566 = vpop.xlane.xlu0 %565
    %v567 = vcvt.f32.s32.to.zero.pseudo %v564
    %v568 = vcvt.f32.s32.to.zero.pseudo %v566
    %vm569 = vcmp.ne.s32.totalorder %v567, %v517
    %vm570 = vcmp.ne.s32.totalorder %v568, %v518
    %v571 = vsel %vm569, 1, 0
    %v572 = vsel %vm570, 1, 0
    %v573 = vcvt.s32.f32 %v571
    %v574 = vcvt.s32.f32 %v572
    %v575 = vsel %vm75, %v573, 0.0
    %v576 = vsel %vm75, %v574, 0.0
    %v577 = vadd.f32 %v575, %v576
    %578 = vadd.xlane.f32.xlu0 %v577
    %v579 = vpop.xlane.xlu0 %578
    %v580 = vrot.slane %v579, 4
    %v581 = vadd.f32 %v579, %v580
    %v582 = vrot.slane %v581, 2
    %v583 = vadd.f32 %v581, %v582
    %v584 = vrot.slane %v583, 1
    %v585 = vadd.f32 %v583, %v584
    %s586 = vtos %v585
    %s587 = sadd.f32 %s409, %s586
    %v588 = vsub.f32 %v553, %v556
    %v589 = vsub.f32 %v554, %v558
    %v590 = vmul.f32 %v588, 14.285714
    %v591 = vmul.f32 %v589, 14.285714
    %v592 = vmul.f32 %v590, 1.442695
    %v593 = vpow.pop %v592
    %v594 = vmul.f32 %v591, 1.442695
    %v595 = vpow.pop %v594
    %596 = vadd.xlane.f32.xlu0 %v593
    %v597 = vpop.xlane.xlu0 %596
    %598 = vadd.xlane.f32.xlu0 %v595
    %v599 = vpop.xlane.xlu0 %598
    %v600 = vrcp.pop %v597
    %v601 = vrcp.pop %v599
    %v602 = vsel %vm75, %v600, 0.0
    %v603 = vsel %vm75, %v601, 0.0
    %v604 = vadd.f32 %v602, %v603
    %605 = vadd.xlane.f32.xlu0 %v604
    %v606 = vpop.xlane.xlu0 %605
    %v607 = vrot.slane %v606, 4
    %v608 = vadd.f32 %v606, %v607
    %v609 = vrot.slane %v608, 2
    %v610 = vadd.f32 %v608, %v609
    %v611 = vrot.slane %v610, 1
    %v612 = vadd.f32 %v610, %v611
    %s613 = vtos %v612
    %s614 = sadd.f32 %s436, %s613
    %vm615 = vcmp.eq.s32.totalorder %v51, %v567
    %vm616 = vcmp.eq.s32.totalorder %v51, %v568
    %v617 = vsel %vm615, 1, 0
    %v618 = vsel %vm616, 1, 0
    %v619 = vcvt.s32.f32 %v617
    %v620 = vcvt.s32.f32 %v618
    %621 = vmatprep.subr.mxu0 0.0
    %622 = vmatpush1.msra.mxu0 %v619
    %623 = vmatprep.subr.mxu0 0.0
    %624 = vmatpush1.msra.mxu0 %v620
    %625 = vmatprep.subr.mxu0 0.0
    %626 = vmatpush1.msra.mxu0 0.0
    %627 = vmatprep.subr.mxu0 0.0
    %628 = vmatpush1.msra.mxu0 0.0
    %629 = vmatprep.subr.mxu0 0.0
    %630 = vmatpush1.msra.mxu0 0.0
    %631 = vmatprep.subr.mxu0 0.0
    %632 = vmatpush1.msra.mxu0 0.0
    %633 = vmatprep.subr.mxu0 0.0
    %634 = vmatpush1.msra.mxu0 0.0
    %635 = vmatprep.subr.mxu0 0.0
    %636 = vmatpush1.msra.mxu0 0.0
    %637 = vmatprep.subr.mxu0 0.0
    %638 = vmatpush1.msra.mxu0 0.0
    %639 = vmatprep.subr.mxu0 0.0
    %640 = vmatpush1.msra.mxu0 0.0
    %641 = vmatprep.subr.mxu0 0.0
    %642 = vmatpush1.msra.mxu0 0.0
    %643 = vmatprep.subr.mxu0 0.0
    %644 = vmatpush1.msra.mxu0 0.0
    %645 = vmatprep.subr.mxu0 0.0
    %646 = vmatpush1.msra.mxu0 0.0
    %647 = vmatprep.subr.mxu0 0.0
    %648 = vmatpush1.msra.mxu0 0.0
    %649 = vmatprep.subr.mxu0 0.0
    %650 = vmatpush1.msra.mxu0 0.0
    %651 = vmatprep.subr.mxu0 0.0
    %652 = vmatpush1.msra.mxu0 0.0
    %653 = vmatprep.subr.mxu0 0.0
    %654 = vmatpush1.msra.mxu0 0.0
    %655 = vmatprep.subr.mxu0 0.0
    %656 = vmatpush1.msra.mxu0 0.0
    %657 = vmatprep.subr.mxu0 0.0
    %658 = vmatpush1.msra.mxu0 0.0
    %659 = vmatprep.subr.mxu0 0.0
    %660 = vmatpush1.msra.mxu0 0.0
    %661 = vmatprep.subr.mxu0 0.0
    %662 = vmatpush1.msra.mxu0 0.0
    %663 = vmatprep.subr.mxu0 0.0
    %664 = vmatpush1.msra.mxu0 0.0
    %665 = vmatprep.subr.mxu0 0.0
    %666 = vmatpush1.msra.mxu0 0.0
    %667 = vmatprep.subr.mxu0 0.0
    %668 = vmatpush1.msra.mxu0 0.0
    %669 = vmatprep.subr.mxu0 0.0
    %670 = vmatpush1.msra.mxu0 0.0
    %671 = vmatprep.subr.mxu0 0.0
    %672 = vmatpush1.msra.mxu0 0.0
    %673 = vmatprep.subr.mxu0 0.0
    %674 = vmatpush1.msra.mxu0 0.0
    %675 = vmatprep.subr.mxu0 0.0
    %676 = vmatpush1.msra.mxu0 0.0
    %677 = vmatprep.subr.mxu0 0.0
    %678 = vmatpush1.msra.mxu0 0.0
    %679 = vmatprep.subr.mxu0 0.0
    %680 = vmatpush1.msra.mxu0 0.0
    %681 = vmatprep.subr.mxu0 0.0
    %682 = vmatpush1.msra.mxu0 0.0
    %683 = vmatprep.subr.mxu0 0.0
    %684 = vmatpush1.msra.mxu0 0.0
    %685 = vmatprep.mubr.f32.mxu0 0.0
    %686 = vmatmul.mubr.f32.gmra.mrb[0].mxu0 %v163
    %v687 = vpop.f32.mrb[0].mxu0
    %v688 = vadd.f32 0.0, %v687
    %v689 = vpop.f32.mrb[0].mxu0
    %690 = vdwg.mxu0
    %691 = vmatprep.subr.mxu0 0.0
    %692 = vmatpush1.msra.mxu0 %v441
    %693 = vmatprep.subr.mxu0 0.0
    %694 = vmatpush1.msra.mxu0 %v442
    %695 = vmatprep.subr.mxu0 0.0
    %696 = vmatpush1.msra.mxu0 0.0
    %697 = vmatprep.subr.mxu0 0.0
    %698 = vmatpush1.msra.mxu0 0.0
    %699 = vmatprep.subr.mxu0 0.0
    %700 = vmatpush1.msra.mxu0 0.0
    %701 = vmatprep.subr.mxu0 0.0
    %702 = vmatpush1.msra.mxu0 0.0
    %703 = vmatprep.subr.mxu0 0.0
    %704 = vmatpush1.msra.mxu0 0.0
    %705 = vmatprep.subr.mxu0 0.0
    %706 = vmatpush1.msra.mxu0 0.0
    %707 = vmatprep.subr.mxu0 0.0
    %708 = vmatpush1.msra.mxu0 0.0
    %709 = vmatprep.subr.mxu0 0.0
    %710 = vmatpush1.msra.mxu0 0.0
    %711 = vmatprep.subr.mxu0 0.0
    %712 = vmatpush1.msra.mxu0 0.0
    %713 = vmatprep.subr.mxu0 0.0
    %714 = vmatpush1.msra.mxu0 0.0
    %715 = vmatprep.subr.mxu0 0.0
    %716 = vmatpush1.msra.mxu0 0.0
    %717 = vmatprep.subr.mxu0 0.0
    %718 = vmatpush1.msra.mxu0 0.0
    %719 = vmatprep.subr.mxu0 0.0
    %720 = vmatpush1.msra.mxu0 0.0
    %721 = vmatprep.subr.mxu0 0.0
    %722 = vmatpush1.msra.mxu0 0.0
    %723 = vmatprep.subr.mxu0 0.0
    %724 = vmatpush1.msra.mxu0 0.0
    %725 = vmatprep.subr.mxu0 0.0
    %726 = vmatpush1.msra.mxu0 0.0
    %727 = vmatprep.subr.mxu0 0.0
    %728 = vmatpush1.msra.mxu0 0.0
    %729 = vmatprep.subr.mxu0 0.0
    %730 = vmatpush1.msra.mxu0 0.0
    %731 = vmatprep.subr.mxu0 0.0
    %732 = vmatpush1.msra.mxu0 0.0
    %733 = vmatprep.subr.mxu0 0.0
    %734 = vmatpush1.msra.mxu0 0.0
    %735 = vmatprep.subr.mxu0 0.0
    %736 = vmatpush1.msra.mxu0 0.0
    %737 = vmatprep.subr.mxu0 0.0
    %738 = vmatpush1.msra.mxu0 0.0
    %739 = vmatprep.subr.mxu0 0.0
    %740 = vmatpush1.msra.mxu0 0.0
    %741 = vmatprep.subr.mxu0 0.0
    %742 = vmatpush1.msra.mxu0 0.0
    %743 = vmatprep.subr.mxu0 0.0
    %744 = vmatpush1.msra.mxu0 0.0
    %745 = vmatprep.subr.mxu0 0.0
    %746 = vmatpush1.msra.mxu0 0.0
    %747 = vmatprep.subr.mxu0 0.0
    %748 = vmatpush1.msra.mxu0 0.0
    %749 = vmatprep.subr.mxu0 0.0
    %750 = vmatpush1.msra.mxu0 0.0
    %751 = vmatprep.subr.mxu0 0.0
    %752 = vmatpush1.msra.mxu0 0.0
    %753 = vmatprep.subr.mxu0 0.0
    %754 = vmatpush1.msra.mxu0 0.0
    %755 = vmatprep.mubr.f32.mxu0 0.0
    %756 = vmatmul.mubr.f32.gmra.mrb[0].mxu0 %v163
    %v757 = vpop.f32.mrb[0].mxu0
    %v758 = vadd.f32 %v688, %v757
    %v759 = vpop.f32.mrb[0].mxu0
    %760 = vdwg.mxu0
    %v761 = vmul.f32 %v593, %v311
    %v762 = vmul.f32 %v595, %v312
    %763 = vadd.xlane.f32.xlu0 %v761
    %v764 = vpop.xlane.xlu0 %763
    %765 = vadd.xlane.f32.xlu0 %v762
    %v766 = vpop.xlane.xlu0 %765
    %v767 = vmul.f32 %v764, %v600
    %v768 = vmul.f32 %v766, %v601
    %v769 = vsel %vm75, %v767, 0.0
    %v770 = vsel %vm75, %v768, 0.0
    %v771 = vadd.f32 %v769, %v770
    %772 = vadd.xlane.f32.xlu0 %v771
    %v773 = vpop.xlane.xlu0 %772
    %v774 = vrot.slane %v773, 4
    %v775 = vadd.f32 %v773, %v774
    %v776 = vrot.slane %v775, 2
    %v777 = vadd.f32 %v775, %v776
    %v778 = vrot.slane %v777, 1
    %v779 = vadd.f32 %v777, %v778
    %s780 = vtos %v779
    %s781 = ssub.f32 %s463, %s780
    %vm782 = vcmp.eq.s32.totalorder %v567, %v97
    %vm783 = vcmp.eq.s32.totalorder %v568, %v98
    %v784 = vsel %vm782, 1, 0
    %v785 = vsel %vm783, 1, 0
    %v786 = vcvt.s32.f32 %v784
    %v787 = vcvt.s32.f32 %v785
    %v788 = vsel %vm75, %v786, 0.0
    %v789 = vsel %vm75, %v787, 0.0
    %v790 = vadd.f32 %v788, %v789
    %791 = vadd.xlane.f32.xlu0 %v790
    %v792 = vpop.xlane.xlu0 %791
    %v793 = vrot.slane %v792, 4
    %v794 = vadd.f32 %v792, %v793
    %v795 = vrot.slane %v794, 2
    %v796 = vadd.f32 %v794, %v795
    %v797 = vrot.slane %v796, 1
    %v798 = vadd.f32 %v796, %v797
    %s799 = vtos %v798
    %s800 = sadd.f32 %s501, %s799
    %vm801 = vcmp.eq.s32.totalorder %v567, %v153
    %vm802 = vcmp.eq.s32.totalorder %v568, %v154
    %v803 = vsel %vm801, 1, 0
    %v804 = vsel %vm802, 1, 0
    %v805 = vcvt.s32.f32 %v803
    %v806 = vcvt.s32.f32 %v804
    %v807 = vsel %vm75, %v805, 0.0
    %v808 = vsel %vm75, %v806, 0.0
    %v809 = vadd.f32 %v807, %v808
    %810 = vadd.xlane.f32.xlu0 %v809
    %v811 = vpop.xlane.xlu0 %810
    %v812 = vrot.slane %v811, 4
    %v813 = vadd.f32 %v811, %v812
    %v814 = vrot.slane %v813, 2
    %v815 = vadd.f32 %v813, %v814
    %v816 = vrot.slane %v815, 1
    %v817 = vadd.f32 %v815, %v816
    %s818 = vtos %v817
    %s819 = sadd.f32 %s800, %s818
    %vm820 = vcmp.eq.s32.totalorder %v389, %v567
    %vm821 = vcmp.eq.s32.totalorder %v390, %v568
    %v822 = vsel %vm820, 1, 0
    %v823 = vsel %vm821, 1, 0
    %v824 = vcvt.s32.f32 %v822
    %v825 = vcvt.s32.f32 %v823
    %v826 = vsel %vm75, %v824, 0.0
    %v827 = vsel %vm75, %v825, 0.0
    %v828 = vadd.f32 %v826, %v827
    %829 = vadd.xlane.f32.xlu0 %v828
    %v830 = vpop.xlane.xlu0 %829
    %v831 = vrot.slane %v830, 4
    %v832 = vadd.f32 %v830, %v831
    %v833 = vrot.slane %v832, 2
    %v834 = vadd.f32 %v832, %v833
    %v835 = vrot.slane %v834, 1
    %v836 = vadd.f32 %v834, %v835
    %s837 = vtos %v836
    %vm838 = vcmp.eq.s32.totalorder %v51, 0
    %v839 = vstv %s781
    %v840 = vsel %vm838, %v839, 0.0
    %vm841 = vcmp.eq.s32.totalorder %v51, 1
    %v842 = vstv %s819
    %v843 = vsel %vm841, %v842, %v840
    %vm844 = vcmp.eq.s32.totalorder %v51, 2
    %v845 = vstv %s587
    %v846 = vsel %vm844, %v845, %v843
    %vm847 = vcmp.eq.s32.totalorder %v51, 3
    %v848 = vstv %s614
    %v849 = vsel %vm847, %v848, %v846
    %vm850 = vcmp.eq.s32.totalorder %v51, 4
    %v851 = vstv %s144
    %v852 = vsel %vm850, %v851, %v849
    %vm853 = vcmp.eq.s32.totalorder %v51, 5
    %v854 = vstv %s837
    %v855 = vsel %vm853, %v854, %v852
    %856 = vst [vmem:[#allocation7] sm:$0x1] %v855
    %857 = vst [vmem:[#allocation8] sm:$0x1] %v758
    %858 = vst [vmem:[#allocation10] sm:$0x1] %v302
    // Predicated region
    $region26: #{tpu_custom_call.1} parent=1 // pred_check
      _
    $region27: #{tpu_custom_call.1} parent=1 // pred_check_branch
      %860 = sbr.rel (0) target = $region29
    $region28: #{tpu_custom_call.1} parent=1 // pred_region
      %s862 = ssub.s32 16, 16
      %863 = vsyncadd [#allocation4], %s862
      %s865 = sshll.u32 [#allocation7], 4
      %s866 = int_to_ptr.vmem [resolvable:$true] %s865
      %868 = dma.vmem_to_hbm [thread:$0]  %s866, 16, %s4, [#allocation4]
    $region29: #{tpu_custom_call.1} parent=1 // pred_fallthru
      _
    // Predicated region
    $region30: #{tpu_custom_call.1} parent=1 // pred_check
      _
    $region31: #{tpu_custom_call.1} parent=1 // pred_check_branch
      %870 = sbr.rel (0) target = $region33
    $region32: #{tpu_custom_call.1} parent=1 // pred_region
      %s872 = ssub.s32 16, 16
      %873 = vsyncadd [#allocation9], %s872
      %s875 = sshll.u32 [#allocation8], 4
      %s876 = int_to_ptr.vmem [resolvable:$true] %s875
      %878 = dma.vmem_to_hbm [thread:$0]  %s876, 16, %s5, [#allocation9]
    $region33: #{tpu_custom_call.1} parent=1 // pred_fallthru
      _
    // Predicated region
    $region34: #{tpu_custom_call.1} parent=1 // pred_check
      _
    $region35: #{tpu_custom_call.1} parent=1 // pred_check_branch
      %880 = sbr.rel (0) target = $region37
    $region36: #{tpu_custom_call.1} parent=1 // pred_region
      %s882 = ssub.s32 16, 16
      %883 = vsyncadd [#allocation9], %s882
      %s885 = sshll.u32 [#allocation10], 4
      %s886 = int_to_ptr.vmem [resolvable:$true] %s885
      %888 = dma.vmem_to_hbm [thread:$0]  %s886, 16, %s6, [#allocation9]
    $region37: #{tpu_custom_call.1} parent=1 // pred_fallthru
      _
    // Predicated region
    $region38: #{tpu_custom_call.1} parent=1 // pred_check
      _
    $region39: #{tpu_custom_call.1} parent=1 // pred_check_branch
      %890 = sbr.rel (0) target = $region41
    $region40: #{tpu_custom_call.1} parent=1 // pred_region
      %891 = dma.done [#allocation4], 16
    $region41: #{tpu_custom_call.1} parent=1 // pred_fallthru
      _
    // Predicated region
    $region42: #{tpu_custom_call.1} parent=1 // pred_check
      _
    $region43: #{tpu_custom_call.1} parent=1 // pred_check_branch
      %893 = sbr.rel (0) target = $region45
    $region44: #{tpu_custom_call.1} parent=1 // pred_region
      %894 = dma.done [#allocation9], 16
    $region45: #{tpu_custom_call.1} parent=1 // pred_fallthru
      _
    // Predicated region
    $region46: #{tpu_custom_call.1} parent=1 // pred_check
      _
    $region47: #{tpu_custom_call.1} parent=1 // pred_check_branch
      %896 = sbr.rel (0) target = $region49
    $region48: #{tpu_custom_call.1} parent=1 // pred_region
      %897 = dma.done [#allocation9], 16
    $region49: #{tpu_custom_call.1} parent=1 // pred_fallthru
      _
    %898 = vsyncpa [#allocation3], 1
    %899 = vsyncpa [#allocation6], 1
    %900 = vsyncpa [#allocation4], 1
    %901 = vsyncpa [#allocation9], 1

</llo_original>
